<compile_context>
chip_gen: v6e
topology: v6e:2x2x1
jax: 0.10.0
libtpu: 0.0.40
codegen_flags: <defaults>
</compile_context>

<pallas_src>
import jax
import jax.numpy as jnp
from jax.experimental import pallas as pl
from jax.experimental.pallas import tpu as pltpu


def _add_relu_matmul_kernel(a_ref, b_ref, w_ref, o_ref):
    # a_ref, b_ref: (1, Cin, rows)   w_ref: (tc, Cin)   o_ref: (1, tc, rows)
    y = jnp.maximum(a_ref[0] + b_ref[0], 0.0)               # VPU: relu(add)
    o_ref[0] = jnp.dot(                                      # MXU: (tc,Cin)@(Cin,rows)
        w_ref[...], y, preferred_element_type=jnp.float32
    ).astype(o_ref.dtype)


def _pick_cout_block(cout):
    # Prefer 2-4 output-channel blocks (>=2 parallel grid steps so v7x can use
    # both TensorCores); each block's sublane dim must be a multiple of 8.
    for nb in (2, 3, 4):
        blk = cout // nb
        if cout % nb == 0 and blk % 8 == 0:
            return blk
    return cout


def add_relu_conv1x1_s2(x21, x35, weight):
    """relu(x21 + x35) -> Conv2d(Cin, Cout, kernel=1, stride=2, bias=False).

    x21, x35: (N, Cin, H, W) float32 (NCHW)
    weight:   (Cout, Cin, 1, 1) float32
    returns:  (N, Cout, ceil(H/2), ceil(W/2)) float32 (NCHW)
    """
    N, Cin, H, W = x21.shape
    Cout = weight.shape[0]

    # Stride-2 1x1 conv: subsample spatially, then contract channels.
    # relu(add) commutes with subsampling, so subsample first (less work).
    a = x21[:, :, ::2, ::2]                      # (N, Cin, Ho, Wo)
    b = x35[:, :, ::2, ::2]
    Ho, Wo = a.shape[2], a.shape[3]
    rows = Ho * Wo

    # Trailing-dim reshapes: no data movement beyond the strided slice itself.
    a2 = a.reshape(N, Cin, rows)                 # (N, Cin, rows)
    b2 = b.reshape(N, Cin, rows)
    w2 = weight.reshape(Cout, Cin)               # (Cout, Cin) -- no transpose

    tc = _pick_cout_block(Cout)
    grid = (N, Cout // tc)                       # Cout axis innermost: a2/b2
                                                 # blocks are not re-fetched.

    out = pl.pallas_call(
        _add_relu_matmul_kernel,
        out_shape=jax.ShapeDtypeStruct((N, Cout, rows), jnp.float32),
        grid_spec=pltpu.PrefetchScalarGridSpec(
            num_scalar_prefetch=0,
            grid=grid,
            in_specs=[
                pl.BlockSpec((1, Cin, rows), lambda n, c: (n, 0, 0)),
                pl.BlockSpec((1, Cin, rows), lambda n, c: (n, 0, 0)),
                pl.BlockSpec((tc, Cin), lambda n, c: (c, 0)),
            ],
            out_specs=pl.BlockSpec((1, tc, rows), lambda n, c: (n, c, 0)),
        ),
        compiler_params=pltpu.CompilerParams(
            dimension_semantics=("parallel", "parallel"),
        ),
    )(a2, b2, w2)

    # Free reshape (trailing contiguous dims) back to NCHW.
    return out.reshape(N, Cout, Ho, Wo)


if __name__ == "__main__":
    key = jax.random.PRNGKey(0)
    k1, k2, k3 = jax.random.split(key, 3)

    N, Cin, H, W = 1, 232, 56, 56
    Cout = 696

    x21 = jax.random.normal(k1, (N, Cin, H, W), dtype=jnp.float32)
    x35 = jax.random.normal(k2, (N, Cin, H, W), dtype=jnp.float32)
    # Deterministic synthetic Conv2d weight (232 -> 696, 1x1, no bias).
    weight = 0.05 * jax.random.normal(k3, (Cout, Cin, 1, 1), dtype=jnp.float32)

    out = jax.block_until_ready(add_relu_conv1x1_s2(x21, x35, weight))
    assert out.shape == (N, Cout, H // 2, W // 2), out.shape

    # Pure-JAX reference for a sanity check.
    y = jnp.maximum(x21 + x35, 0.0)
    ref = jax.lax.conv_general_dilated(
        y, weight, window_strides=(2, 2), padding="VALID",
        dimension_numbers=("NCHW", "OIHW", "NCHW"),
    )
    assert jnp.allclose(out, ref, atol=1e-3, rtol=1e-3)

    print("KERNEL_OK")
</pallas_src>

<mosaic_0001>
module attributes {stable_mosaic.version = 11 : i64} {
  func.func @_add_relu_matmul_kernel(%arg0: i32, %arg1: i32, %arg2: memref<1x232x784xf32, #tpu.memory_space<vmem>>, %arg3: memref<1x232x784xf32, #tpu.memory_space<vmem>>, %arg4: memref<232x232xf32, #tpu.memory_space<vmem>>, %arg5: memref<1x232x784xf32, #tpu.memory_space<vmem>>) attributes {dimension_semantics = [#tpu.dimension_semantics<parallel>, #tpu.dimension_semantics<parallel>], iteration_bounds = array<i64: 1, 3>, scalar_prefetch = 0 : i64, scratch_operands = 0 : i64, tpu.core_type = #tpu.core_type<tc>, window_params = [{transform_indices = @transform_0, window_bounds = array<i64: 1, 232, 784>}, {transform_indices = @transform_1, window_bounds = array<i64: 1, 232, 784>}, {transform_indices = @transform_2, window_bounds = array<i64: 232, 232>}, {transform_indices = @transform_3, window_bounds = array<i64: 1, 232, 784>}]} {
    %c0 = arith.constant 0 : index
    %c0_0 = arith.constant 0 : index
    %c0_1 = arith.constant 0 : index
    %0 = vector.load %arg2[%c0, %c0_0, %c0_1] : memref<1x232x784xf32, #tpu.memory_space<vmem>>, vector<1x232x784xf32>
    %1 = vector.shape_cast %0 : vector<1x232x784xf32> to vector<232x784xf32>
    %c0_2 = arith.constant 0 : index
    %c0_3 = arith.constant 0 : index
    %c0_4 = arith.constant 0 : index
    %2 = vector.load %arg3[%c0_2, %c0_3, %c0_4] : memref<1x232x784xf32, #tpu.memory_space<vmem>>, vector<1x232x784xf32>
    %3 = vector.shape_cast %2 : vector<1x232x784xf32> to vector<232x784xf32>
    %4 = arith.addf %1, %3 : vector<232x784xf32>
    %cst = arith.constant 0.000000e+00 : f32
    %5 = vector.broadcast %cst : f32 to vector<232x784xf32>
    %6 = arith.maximumf %4, %5 : vector<232x784xf32>
    %c0_5 = arith.constant 0 : index
    %c0_6 = arith.constant 0 : index
    %7 = vector.load %arg4[%c0_5, %c0_6] : memref<232x232xf32, #tpu.memory_space<vmem>>, vector<232x232xf32>
    %cst_7 = arith.constant dense<0.000000e+00> : vector<232x784xf32>
    %8 = tpu.matmul %7, %6, %cst_7 {dimension_numbers = #tpu.dot_dimension_numbers<[1], [0], [0], [1], [0, 0, 1, 1], [], []>} : vector<232x232xf32>, vector<232x784xf32>, vector<232x784xf32> -> vector<232x784xf32>
    %c0_8 = arith.constant 0 : index
    %c0_9 = arith.constant 0 : index
    %c0_10 = arith.constant 0 : index
    %9 = vector.load %arg5[%c0_8, %c0_9, %c0_10] : memref<1x232x784xf32, #tpu.memory_space<vmem>>, vector<1x232x784xf32>
    %10 = vector.shape_cast %9 : vector<1x232x784xf32> to vector<232x784xf32>
    %11 = vector.shape_cast %8 : vector<232x784xf32> to vector<1x232x784xf32>
    tpu.vector_store %arg5[%c0_8, %c0_9, %c0_10], %11 {strides = array<i32>} : memref<1x232x784xf32, #tpu.memory_space<vmem>>, vector<1x232x784xf32>,
    return
  }
  func.func @transform_0(%arg0: i32, %arg1: i32) -> (i32, i32, i32) {
    %c0_i32 = arith.constant 0 : i32
    %c0_i32_0 = arith.constant 0 : i32
    %c0_i32_1 = arith.constant 0 : i32
    return %arg0, %c0_i32, %c0_i32_0 : i32, i32, i32
  }
  func.func @transform_1(%arg0: i32, %arg1: i32) -> (i32, i32, i32) {
    %c0_i32 = arith.constant 0 : i32
    %c0_i32_0 = arith.constant 0 : i32
    %c0_i32_1 = arith.constant 0 : i32
    return %arg0, %c0_i32, %c0_i32_0 : i32, i32, i32
  }
  func.func @transform_2(%arg0: i32, %arg1: i32) -> (i32, i32) {
    %c0_i32 = arith.constant 0 : i32
    %c0_i32_0 = arith.constant 0 : i32
    return %arg1, %c0_i32 : i32, i32
  }
  func.func @transform_3(%arg0: i32, %arg1: i32) -> (i32, i32, i32) {
    %c0_i32 = arith.constant 0 : i32
    %c0_i32_0 = arith.constant 0 : i32
    return %arg0, %arg1, %c0_i32 : i32, i32, i32
  }
}

</mosaic_0001>

<llo_original>
// kernel: tpu_custom_call.1
$region0: #{tpu_custom_call.1}
  #allocation0 [shape = 'u32[]', space=smem, size = 0x4, offset = 0x4, fixed_abs, tag = 'smem constant byte address 0x4 - core index']
  #allocation1 [shape = 'u32[144,128]{1,0:T(1,128)}', space=vmem, size = 0x12000, scoped, tag = 'internal scratch']
  %s0 = inlined_call_operand.vmem [shape: f32[1,232,784], index: 0, kind: input, shape index: {}]
  %s1 = inlined_call_operand.vmem [shape: f32[1,232,784], index: 1, kind: input, shape index: {}]
  %s2 = inlined_call_operand.vmem [shape: f32[696,232], index: 2, kind: input, shape index: {}]
  %s3 = inlined_call_operand.vmem [shape: f32[1,696,784], index: 3, kind: output, shape index: {}]
  %s4 = sld [smem:[#allocation0]]
  $region45: #{tpu_custom_call.1} parent=0
    _
  %s6 = ssub.s32 1, %s4
  %s7 = scalar_select 0, %s6, %s4
  loop: start=0, step=1, limit=5
  $region2: #{tpu_custom_call.1} parent=0 // loop_pre_header
    _
  $region3: #{tpu_custom_call.1} parent=0 // loop_header
    %s9 = sphi 0, %s13
    %p10 = scmp.ge.s32.totalorder %s9, 5
    %s16 = sphi 0, %s28
    %s17 = sphi 0, %s24
    %s18 = sphi 0, %s16
    %s19 = sphi 0, %s17
    %s20 = sphi 0, %s18
    %s21 = sphi 0, %s19
    %s31 = sphi 0, %s33
    %s34 = sphi 0, %s31
    %s35 = sphi 0, %s34
    %s51 = sphi 0, %s35
    %s57 = sphi 0, %s59
    %s60 = sphi 0, %s57
    %s61 = sphi 0, %s60
    %s77 = sphi 0, %s61
    %s83 = sphi 0, %s85
    %s86 = sphi 0, %s83
    %s87 = sphi 0, %s86
    %s103 = sphi 0, %s87
    %s111 = sphi 0, %s113
    %s114 = sphi 0, %s111
    %s115 = sphi 0, %s114
    %s131 = sphi 0, %s115
  $region4: #{tpu_custom_call.1} parent=0 // loop_header_branch
    %12 = sbr.rel (%p10) target = $region8
  $region5: #{tpu_custom_call.1} parent=0 // loop_body
    %s14 = ssub.s32 %s9, 1
    %s15 = ssub.s32 %s9, 2
    %s22 = sadd.s32 1, %s17
    %p23 = scmp.ge.s32.totalorder %s22, 3
    %s24 = scalar_select %p23, 0, %s22
    %s25 = sadd.s32 1, %s16
    %s26 = scalar_select %p23, %s25, %s16
    %p27 = scmp.ge.s32.totalorder %s26, 1
    %s28 = scalar_select %p27, 0, %s26
    %s29 = ssub.s32 %s16, %s28
    %p30 = scmp.eq.s32.totalorder %s29, 0
    %s32 = sadd.s32 %s31, 1
    %s33 = scalar_select %p30, %s31, %s32
    %p36 = pneg %p30
    %p37 = scmp.eq.s32.totalorder %s9, 2
    %p38 = por %p36, %p37
    %p39 = scmp.ne.s32.totalorder %s31, %s34
    %p40 = scmp.eq.s32.totalorder %s9, 0
    %p41 = por %p39, %p40
    %p42 = scmp.ne.s32.totalorder %s31, %s34
    %p43 = scmp.eq.s32.totalorder %s14, 2
    %p44 = por %p42, %p43
    %p45 = scmp.ne.s32.totalorder %s34, %s35
    %p46 = scmp.eq.s32.totalorder %s14, 0
    %p47 = por %p45, %p46
    %p48 = scmp.ne.s32.totalorder %s34, %s35
    %p49 = scmp.eq.s32.totalorder %s15, 2
    %p50 = por %p48, %p49
    %p52 = scmp.ne.s32.totalorder %s35, %s51
    %p53 = scmp.eq.s32.totalorder %s15, 0
    %p54 = por %p52, %p53
    %s55 = ssub.s32 %s16, %s28
    %p56 = scmp.eq.s32.totalorder %s55, 0
    %s58 = sadd.s32 %s57, 1
    %s59 = scalar_select %p56, %s57, %s58
    %p62 = pneg %p56
    %p63 = scmp.eq.s32.totalorder %s9, 2
    %p64 = por %p62, %p63
    %p65 = scmp.ne.s32.totalorder %s57, %s60
    %p66 = scmp.eq.s32.totalorder %s9, 0
    %p67 = por %p65, %p66
    %p68 = scmp.ne.s32.totalorder %s57, %s60
    %p69 = scmp.eq.s32.totalorder %s14, 2
    %p70 = por %p68, %p69
    %p71 = scmp.ne.s32.totalorder %s60, %s61
    %p72 = scmp.eq.s32.totalorder %s14, 0
    %p73 = por %p71, %p72
    %p74 = scmp.ne.s32.totalorder %s60, %s61
    %p75 = scmp.eq.s32.totalorder %s15, 2
    %p76 = por %p74, %p75
    %p78 = scmp.ne.s32.totalorder %s61, %s77
    %p79 = scmp.eq.s32.totalorder %s15, 0
    %p80 = por %p78, %p79
    %s81 = ssub.s32 %s17, %s24
    %p82 = scmp.eq.s32.totalorder %s81, 0
    %s84 = sadd.s32 %s83, 1
    %s85 = scalar_select %p82, %s83, %s84
    %p88 = pneg %p82
    %p89 = scmp.eq.s32.totalorder %s9, 2
    %p90 = por %p88, %p89
    %p91 = scmp.ne.s32.totalorder %s83, %s86
    %p92 = scmp.eq.s32.totalorder %s9, 0
    %p93 = por %p91, %p92
    %p94 = scmp.ne.s32.totalorder %s83, %s86
    %p95 = scmp.eq.s32.totalorder %s14, 2
    %p96 = por %p94, %p95
    %p97 = scmp.ne.s32.totalorder %s86, %s87
    %p98 = scmp.eq.s32.totalorder %s14, 0
    %p99 = por %p97, %p98
    %p100 = scmp.ne.s32.totalorder %s86, %s87
    %p101 = scmp.eq.s32.totalorder %s15, 2
    %p102 = por %p100, %p101
    %p104 = scmp.ne.s32.totalorder %s87, %s103
    %p105 = scmp.eq.s32.totalorder %s15, 0
    %p106 = por %p104, %p105
    %s107 = ssub.s32 %s16, %s28
    %s108 = ssub.s32 %s17, %s24
    %s109 = sor.u32 %s107, %s108
    %p110 = scmp.eq.s32.totalorder %s109, 0
    %s112 = sadd.s32 %s111, 1
    %s113 = scalar_select %p110, %s111, %s112
    %p116 = pneg %p110
    %p117 = scmp.eq.s32.totalorder %s9, 2
    %p118 = por %p116, %p117
    %p119 = scmp.ne.s32.totalorder %s111, %s114
    %p120 = scmp.eq.s32.totalorder %s9, 0
    %p121 = por %p119, %p120
    %p122 = scmp.ne.s32.totalorder %s111, %s114
    %p123 = scmp.eq.s32.totalorder %s14, 2
    %p124 = por %p122, %p123
    %p125 = scmp.ne.s32.totalorder %s114, %s115
    %p126 = scmp.eq.s32.totalorder %s14, 0
    %p127 = por %p125, %p126
    %p128 = scmp.ne.s32.totalorder %s114, %s115
    %p129 = scmp.eq.s32.totalorder %s15, 2
    %p130 = por %p128, %p129
    %p132 = scmp.ne.s32.totalorder %s115, %s131
    %p133 = scmp.eq.s32.totalorder %s15, 0
    %p134 = por %p132, %p133
    %p135 = scmp.le.s32.totalorder 1, %s9
    %p136 = scmp.lt.s32.totalorder %s9, 4
    %p137 = pnand %p135, %p136
    %p138 = pneg %p137
    // Predicated region
    $region9: #{tpu_custom_call.1} parent=5 // pred_check
      _
    $region10: #{tpu_custom_call.1} parent=5 // pred_check_branch
      %140 = sbr.rel (%p137) target = $region12
    $region11: #{tpu_custom_call.1} parent=5 // pred_region
      %s141 = ssub.s32 %s9, 1
      // Predicated region
      $region13: #{tpu_custom_call.1} parent=11 // pred_check
        %p142 = pneg %p47
      $region14: #{tpu_custom_call.1} parent=11 // pred_check_branch
        %144 = sbr.rel (%p142) target = $region16
      $region15: #{tpu_custom_call.1} parent=11 // pred_region
        %p145 = scmp.lt.s32.totalorder %s18, 0
        %s146 = scalar_select %p145, %s18, 0
        %s147 = smul.addr %s146, 203
        %s148 = smul.addr %s147, 8
        %s149 = scalar_lea.vmem %s0, %s148
      $region16: #{tpu_custom_call.1} parent=11 // pred_fallthru
        _
      // Predicated region
      $region17: #{tpu_custom_call.1} parent=11 // pred_check
        %p150 = pneg %p73
      $region18: #{tpu_custom_call.1} parent=11 // pred_check_branch
        %152 = sbr.rel (%p150) target = $region20
      $region19: #{tpu_custom_call.1} parent=11 // pred_region
        %p153 = scmp.lt.s32.totalorder %s18, 0
        %s154 = scalar_select %p153, %s18, 0
        %s155 = smul.addr %s154, 203
        %s156 = smul.addr %s155, 8
        %s157 = scalar_lea.vmem %s1, %s156
      $region20: #{tpu_custom_call.1} parent=11 // pred_fallthru
        _
    $region12: #{tpu_custom_call.1} parent=5 // pred_fallthru
      _
    %p158 = scmp.lt.s32.totalorder %s9, 3
    // Predicated region
    $region21: #{tpu_custom_call.1} parent=5 // pred_check
      %p159 = pneg %p158
    $region22: #{tpu_custom_call.1} parent=5 // pred_check_branch
      %161 = sbr.rel (%p159) target = $region24
    $region23: #{tpu_custom_call.1} parent=5 // pred_region
      // Predicated region
      $region25: #{tpu_custom_call.1} parent=23 // pred_check
        %p162 = pneg %p93
      $region26: #{tpu_custom_call.1} parent=23 // pred_check_branch
        %164 = sbr.rel (%p162) target = $region28
      $region27: #{tpu_custom_call.1} parent=23 // pred_region
        %s165 = smul.u32 29, %s17
        %p166 = scmp.lt.s32.totalorder %s165, 86
        %s167 = scalar_select %p166, %s165, 86
        %s168 = smul.addr %s167, 2
        %s169 = smul.addr %s168, 8
        %s170 = scalar_lea.vmem %s2, %s169
        %s171 = smul.u32 29, %s17
      $region28: #{tpu_custom_call.1} parent=23 // pred_fallthru
        _
    $region24: #{tpu_custom_call.1} parent=5 // pred_fallthru
      _
    %p172 = scmp.le.s32.totalorder 1, %s9
    %p173 = scmp.lt.s32.totalorder %s9, 4
    %p174 = pnand %p172, %p173
    %p175 = pneg %p174
    // Predicated region
    $region29: #{tpu_custom_call.1} parent=5 // pred_check
      _
    $region30: #{tpu_custom_call.1} parent=5 // pred_check_branch
      %177 = sbr.rel (%p174) target = $region32
    $region31: #{tpu_custom_call.1} parent=5 // pred_region
      %s178 = ssub.s32 %s9, 1
      %p179 = scmp.lt.s32.totalorder %s18, 0
      %s180 = scalar_select %p179, %s18, 0
      %s181 = smul.addr %s180, 203
      %s182 = smul.addr %s181, 8
      %s183 = scalar_lea.vmem %s0, %s182
      %p184 = pneg %p47
      %p185 = pneg %p44
      %p186 = scmp.lt.s32.totalorder %s18, 0
      %s187 = scalar_select %p186, %s18, 0
      %s188 = smul.addr %s187, 203
      %s189 = smul.addr %s188, 8
      %s190 = scalar_lea.vmem %s1, %s189
      %p191 = pneg %p73
      %p192 = pneg %p70
      %s193 = smul.u32 29, %s19
      %p194 = scmp.lt.s32.totalorder %s193, 86
      %s195 = scalar_select %p194, %s193, 86
      %s196 = smul.addr %s195, 2
      %s197 = smul.addr %s196, 8
      %s198 = scalar_lea.vmem %s2, %s197
      %p199 = pneg %p99
      %p200 = pneg %p96
      %p201 = pneg %p127
      %p202 = pneg %p124
      %s203 = smul.u32 29, %s19
      %p204 = scmp.lt.s32.totalorder %s18, 0
      %s205 = scalar_select %p204, %s18, 0
      %p206 = scmp.lt.s32.totalorder %s203, 86
      %s207 = scalar_select %p206, %s203, 86
      %s208 = smul.addr %s207, 7
      %s209 = smul.addr %s205, 609
      %s210 = sadd.s32 %s208, %s209
      %s211 = smul.addr %s210, 8
      %s212 = scalar_lea.vmem %s3, %s211
      %p213 = scmp.lt.s32.totalorder %s18, 0
      %s214 = scalar_select %p213, %s18, 0
      %s215 = smul.addr %s214, 203
      %s216 = smul.addr %s215, 8
      %s217 = scalar_lea.vmem %s0, %s216
      %p218 = scmp.lt.s32.totalorder %s18, 0
      %s219 = scalar_select %p218, %s18, 0
      %s220 = smul.addr %s219, 203
      %s221 = smul.addr %s220, 8
      %s222 = scalar_lea.vmem %s1, %s221
      %s223 = smul.u32 29, %s19
      %p224 = scmp.lt.s32.totalorder %s223, 86
      %s225 = scalar_select %p224, %s223, 86
      %s226 = smul.addr %s225, 2
      %s227 = smul.addr %s226, 8
      %s228 = scalar_lea.vmem %s2, %s227
      %s229 = smul.u32 29, %s19
      %s230 = smul.u32 29, %s19
      %p231 = scmp.lt.s32.totalorder %s18, 0
      %s232 = scalar_select %p231, %s18, 0
      %p233 = scmp.lt.s32.totalorder %s230, 86
      %s234 = scalar_select %p233, %s230, 86
      %s235 = smul.addr %s234, 7
      %s236 = smul.addr %s232, 609
      %s237 = sadd.s32 %s235, %s236
      %s238 = smul.addr %s237, 8
      %s239 = scalar_lea.vmem %s3, %s238
      %s240 = smul.u32 29, %s19
      %v241 = vld [vmem:[%s217] sm:$0xff]
      %v242 = vld [vmem:[%s217 + $0x8] sm:$0xff]
      %v243 = vld [vmem:[%s217 + $0x10] sm:$0xff]
      %v244 = vld [vmem:[%s217 + $0x18] sm:$0xff]
      %v245 = vld [vmem:[%s217 + $0x20] sm:$0xff]
      %v246 = vld [vmem:[%s217 + $0x28] sm:$0xff]
      %v247 = vld [vmem:[%s217 + $0x30] sm:$0xff]
      %v248 = vld [vmem:[%s217 + $0x38] sm:$0xff]
      %v249 = vld [vmem:[%s217 + $0x40] sm:$0xff]
      %v250 = vld [vmem:[%s217 + $0x48] sm:$0xff]
      %v251 = vld [vmem:[%s217 + $0x50] sm:$0xff]
      %v252 = vld [vmem:[%s217 + $0x58] sm:$0xff]
      %v253 = vld [vmem:[%s217 + $0x60] sm:$0xff]
      %v254 = vld [vmem:[%s217 + $0x68] sm:$0xff]
      %v255 = vld [vmem:[%s217 + $0x70] sm:$0xff]
      %v256 = vld [vmem:[%s217 + $0x78] sm:$0xff]
      %v257 = vld [vmem:[%s217 + $0x80] sm:$0xff]
      %v258 = vld [vmem:[%s217 + $0x88] sm:$0xff]
      %v259 = vld [vmem:[%s217 + $0x90] sm:$0xff]
      %v260 = vld [vmem:[%s217 + $0x98] sm:$0xff]
      %v261 = vld [vmem:[%s217 + $0xa0] sm:$0xff]
      %v262 = vld [vmem:[%s217 + $0xa8] sm:$0xff]
      %v263 = vld [vmem:[%s217 + $0xb0] sm:$0xff]
      %v264 = vld [vmem:[%s217 + $0xb8] sm:$0xff]
      %v265 = vld [vmem:[%s217 + $0xc0] sm:$0xff]
      %v266 = vld [vmem:[%s217 + $0xc8] sm:$0xff]
      %v267 = vld [vmem:[%s217 + $0xd0] sm:$0xff]
      %v268 = vld [vmem:[%s217 + $0xd8] sm:$0xff]
      %v269 = vld [vmem:[%s217 + $0xe0] sm:$0xff]
      %v270 = vld [vmem:[%s217 + $0xe8] sm:$0xff]
      %v271 = vld [vmem:[%s217 + $0xf0] sm:$0xff]
      %v272 = vld [vmem:[%s217 + $0xf8] sm:$0xff]
      %v273 = vld [vmem:[%s217 + $0x100] sm:$0xff]
      %v274 = vld [vmem:[%s217 + $0x108] sm:$0xff]
      %v275 = vld [vmem:[%s217 + $0x110] sm:$0xff]
      %v276 = vld [vmem:[%s217 + $0x118] sm:$0xff]
      %v277 = vld [vmem:[%s217 + $0x120] sm:$0xff]
      %v278 = vld [vmem:[%s217 + $0x128] sm:$0xff]
      %v279 = vld [vmem:[%s217 + $0x130] sm:$0xff]
      %v280 = vld [vmem:[%s217 + $0x138] sm:$0xff]
      %v281 = vld [vmem:[%s217 + $0x140] sm:$0xff]
      %v282 = vld [vmem:[%s217 + $0x148] sm:$0xff]
      %v283 = vld [vmem:[%s217 + $0x150] sm:$0xff]
      %v284 = vld [vmem:[%s217 + $0x158] sm:$0xff]
      %v285 = vld [vmem:[%s217 + $0x160] sm:$0xff]
      %v286 = vld [vmem:[%s217 + $0x168] sm:$0xff]
      %v287 = vld [vmem:[%s217 + $0x170] sm:$0xff]
      %v288 = vld [vmem:[%s217 + $0x178] sm:$0xff]
      %v289 = vld [vmem:[%s217 + $0x180] sm:$0xff]
      %v290 = vld [vmem:[%s217 + $0x188] sm:$0xff]
      %v291 = vld [vmem:[%s217 + $0x190] sm:$0xff]
      %v292 = vld [vmem:[%s217 + $0x198] sm:$0xff]
      %v293 = vld [vmem:[%s217 + $0x1a0] sm:$0xff]
      %v294 = vld [vmem:[%s217 + $0x1a8] sm:$0xff]
      %v295 = vld [vmem:[%s217 + $0x1b0] sm:$0xff]
      %v296 = vld [vmem:[%s217 + $0x1b8] sm:$0xff]
      %v297 = vld [vmem:[%s217 + $0x1c0] sm:$0xff]
      %v298 = vld [vmem:[%s217 + $0x1c8] sm:$0xff]
      %v299 = vld [vmem:[%s217 + $0x1d0] sm:$0xff]
      %v300 = vld [vmem:[%s217 + $0x1d8] sm:$0xff]
      %v301 = vld [vmem:[%s217 + $0x1e0] sm:$0xff]
      %v302 = vld [vmem:[%s217 + $0x1e8] sm:$0xff]
      %v303 = vld [vmem:[%s217 + $0x1f0] sm:$0xff]
      %v304 = vld [vmem:[%s217 + $0x1f8] sm:$0xff]
      %v305 = vld [vmem:[%s217 + $0x200] sm:$0xff]
      %v306 = vld [vmem:[%s217 + $0x208] sm:$0xff]
      %v307 = vld [vmem:[%s217 + $0x210] sm:$0xff]
      %v308 = vld [vmem:[%s217 + $0x218] sm:$0xff]
      %v309 = vld [vmem:[%s217 + $0x220] sm:$0xff]
      %v310 = vld [vmem:[%s217 + $0x228] sm:$0xff]
      %v311 = vld [vmem:[%s217 + $0x230] sm:$0xff]
      %v312 = vld [vmem:[%s217 + $0x238] sm:$0xff]
      %v313 = vld [vmem:[%s217 + $0x240] sm:$0xff]
      %v314 = vld [vmem:[%s217 + $0x248] sm:$0xff]
      %v315 = vld [vmem:[%s217 + $0x250] sm:$0xff]
      %v316 = vld [vmem:[%s217 + $0x258] sm:$0xff]
      %v317 = vld [vmem:[%s217 + $0x260] sm:$0xff]
      %v318 = vld [vmem:[%s217 + $0x268] sm:$0xff]
      %v319 = vld [vmem:[%s217 + $0x270] sm:$0xff]
      %v320 = vld [vmem:[%s217 + $0x278] sm:$0xff]
      %v321 = vld [vmem:[%s217 + $0x280] sm:$0xff]
      %v322 = vld [vmem:[%s217 + $0x288] sm:$0xff]
      %v323 = vld [vmem:[%s217 + $0x290] sm:$0xff]
      %v324 = vld [vmem:[%s217 + $0x298] sm:$0xff]
      %v325 = vld [vmem:[%s217 + $0x2a0] sm:$0xff]
      %v326 = vld [vmem:[%s217 + $0x2a8] sm:$0xff]
      %v327 = vld [vmem:[%s217 + $0x2b0] sm:$0xff]
      %v328 = vld [vmem:[%s217 + $0x2b8] sm:$0xff]
      %v329 = vld [vmem:[%s217 + $0x2c0] sm:$0xff]
      %v330 = vld [vmem:[%s217 + $0x2c8] sm:$0xff]
      %v331 = vld [vmem:[%s217 + $0x2d0] sm:$0xff]
      %v332 = vld [vmem:[%s217 + $0x2d8] sm:$0xff]
      %v333 = vld [vmem:[%s217 + $0x2e0] sm:$0xff]
      %v334 = vld [vmem:[%s217 + $0x2e8] sm:$0xff]
      %v335 = vld [vmem:[%s217 + $0x2f0] sm:$0xff]
      %v336 = vld [vmem:[%s217 + $0x2f8] sm:$0xff]
      %v337 = vld [vmem:[%s217 + $0x300] sm:$0xff]
      %v338 = vld [vmem:[%s217 + $0x308] sm:$0xff]
      %v339 = vld [vmem:[%s217 + $0x310] sm:$0xff]
      %v340 = vld [vmem:[%s217 + $0x318] sm:$0xff]
      %v341 = vld [vmem:[%s217 + $0x320] sm:$0xff]
      %v342 = vld [vmem:[%s217 + $0x328] sm:$0xff]
      %v343 = vld [vmem:[%s217 + $0x330] sm:$0xff]
      %v344 = vld [vmem:[%s217 + $0x338] sm:$0xff]
      %v345 = vld [vmem:[%s217 + $0x340] sm:$0xff]
      %v346 = vld [vmem:[%s217 + $0x348] sm:$0xff]
      %v347 = vld [vmem:[%s217 + $0x350] sm:$0xff]
      %v348 = vld [vmem:[%s217 + $0x358] sm:$0xff]
      %v349 = vld [vmem:[%s217 + $0x360] sm:$0xff]
      %v350 = vld [vmem:[%s217 + $0x368] sm:$0xff]
      %v351 = vld [vmem:[%s217 + $0x370] sm:$0xff]
      %v352 = vld [vmem:[%s217 + $0x378] sm:$0xff]
      %v353 = vld [vmem:[%s217 + $0x380] sm:$0xff]
      %v354 = vld [vmem:[%s217 + $0x388] sm:$0xff]
      %v355 = vld [vmem:[%s217 + $0x390] sm:$0xff]
      %v356 = vld [vmem:[%s217 + $0x398] sm:$0xff]
      %v357 = vld [vmem:[%s217 + $0x3a0] sm:$0xff]
      %v358 = vld [vmem:[%s217 + $0x3a8] sm:$0xff]
      %v359 = vld [vmem:[%s217 + $0x3b0] sm:$0xff]
      %v360 = vld [vmem:[%s217 + $0x3b8] sm:$0xff]
      %v361 = vld [vmem:[%s217 + $0x3c0] sm:$0xff]
      %v362 = vld [vmem:[%s217 + $0x3c8] sm:$0xff]
      %v363 = vld [vmem:[%s217 + $0x3d0] sm:$0xff]
      %v364 = vld [vmem:[%s217 + $0x3d8] sm:$0xff]
      %v365 = vld [vmem:[%s217 + $0x3e0] sm:$0xff]
      %v366 = vld [vmem:[%s217 + $0x3e8] sm:$0xff]
      %v367 = vld [vmem:[%s217 + $0x3f0] sm:$0xff]
      %v368 = vld [vmem:[%s217 + $0x3f8] sm:$0xff]
      %v369 = vld [vmem:[%s217 + $0x400] sm:$0xff]
      %v370 = vld [vmem:[%s217 + $0x408] sm:$0xff]
      %v371 = vld [vmem:[%s217 + $0x410] sm:$0xff]
      %v372 = vld [vmem:[%s217 + $0x418] sm:$0xff]
      %v373 = vld [vmem:[%s217 + $0x420] sm:$0xff]
      %v374 = vld [vmem:[%s217 + $0x428] sm:$0xff]
      %v375 = vld [vmem:[%s217 + $0x430] sm:$0xff]
      %v376 = vld [vmem:[%s217 + $0x438] sm:$0xff]
      %v377 = vld [vmem:[%s217 + $0x440] sm:$0xff]
      %v378 = vld [vmem:[%s217 + $0x448] sm:$0xff]
      %v379 = vld [vmem:[%s217 + $0x450] sm:$0xff]
      %v380 = vld [vmem:[%s217 + $0x458] sm:$0xff]
      %v381 = vld [vmem:[%s217 + $0x460] sm:$0xff]
      %v382 = vld [vmem:[%s217 + $0x468] sm:$0xff]
      %v383 = vld [vmem:[%s217 + $0x470] sm:$0xff]
      %v384 = vld [vmem:[%s217 + $0x478] sm:$0xff]
      %v385 = vld [vmem:[%s217 + $0x480] sm:$0xff]
      %v386 = vld [vmem:[%s217 + $0x488] sm:$0xff]
      %v387 = vld [vmem:[%s217 + $0x490] sm:$0xff]
      %v388 = vld [vmem:[%s217 + $0x498] sm:$0xff]
      %v389 = vld [vmem:[%s217 + $0x4a0] sm:$0xff]
      %v390 = vld [vmem:[%s217 + $0x4a8] sm:$0xff]
      %v391 = vld [vmem:[%s217 + $0x4b0] sm:$0xff]
      %v392 = vld [vmem:[%s217 + $0x4b8] sm:$0xff]
      %v393 = vld [vmem:[%s217 + $0x4c0] sm:$0xff]
      %v394 = vld [vmem:[%s217 + $0x4c8] sm:$0xff]
      %v395 = vld [vmem:[%s217 + $0x4d0] sm:$0xff]
      %v396 = vld [vmem:[%s217 + $0x4d8] sm:$0xff]
      %v397 = vld [vmem:[%s217 + $0x4e0] sm:$0xff]
      %v398 = vld [vmem:[%s217 + $0x4e8] sm:$0xff]
      %v399 = vld [vmem:[%s217 + $0x4f0] sm:$0xff]
      %v400 = vld [vmem:[%s217 + $0x4f8] sm:$0xff]
      %v401 = vld [vmem:[%s217 + $0x500] sm:$0xff]
      %v402 = vld [vmem:[%s217 + $0x508] sm:$0xff]
      %v403 = vld [vmem:[%s217 + $0x510] sm:$0xff]
      %v404 = vld [vmem:[%s217 + $0x518] sm:$0xff]
      %v405 = vld [vmem:[%s217 + $0x520] sm:$0xff]
      %v406 = vld [vmem:[%s217 + $0x528] sm:$0xff]
      %v407 = vld [vmem:[%s217 + $0x530] sm:$0xff]
      %v408 = vld [vmem:[%s217 + $0x538] sm:$0xff]
      %v409 = vld [vmem:[%s217 + $0x540] sm:$0xff]
      %v410 = vld [vmem:[%s217 + $0x548] sm:$0xff]
      %v411 = vld [vmem:[%s217 + $0x550] sm:$0xff]
      %v412 = vld [vmem:[%s217 + $0x558] sm:$0xff]
      %v413 = vld [vmem:[%s217 + $0x560] sm:$0xff]
      %v414 = vld [vmem:[%s217 + $0x568] sm:$0xff]
      %v415 = vld [vmem:[%s217 + $0x570] sm:$0xff]
      %v416 = vld [vmem:[%s217 + $0x578] sm:$0xff]
      %v417 = vld [vmem:[%s217 + $0x580] sm:$0xff]
      %v418 = vld [vmem:[%s217 + $0x588] sm:$0xff]
      %v419 = vld [vmem:[%s217 + $0x590] sm:$0xff]
      %v420 = vld [vmem:[%s217 + $0x598] sm:$0xff]
      %v421 = vld [vmem:[%s217 + $0x5a0] sm:$0xff]
      %v422 = vld [vmem:[%s217 + $0x5a8] sm:$0xff]
      %v423 = vld [vmem:[%s217 + $0x5b0] sm:$0xff]
      %v424 = vld [vmem:[%s217 + $0x5b8] sm:$0xff]
      %v425 = vld [vmem:[%s217 + $0x5c0] sm:$0xff]
      %v426 = vld [vmem:[%s217 + $0x5c8] sm:$0xff]
      %v427 = vld [vmem:[%s217 + $0x5d0] sm:$0xff]
      %v428 = vld [vmem:[%s217 + $0x5d8] sm:$0xff]
      %v429 = vld [vmem:[%s217 + $0x5e0] sm:$0xff]
      %v430 = vld [vmem:[%s217 + $0x5e8] sm:$0xff]
      %v431 = vld [vmem:[%s217 + $0x5f0] sm:$0xff]
      %v432 = vld [vmem:[%s217 + $0x5f8] sm:$0xff]
      %v433 = vld [vmem:[%s217 + $0x600] sm:$0xff]
      %v434 = vld [vmem:[%s217 + $0x608] sm:$0xff]
      %v435 = vld [vmem:[%s217 + $0x610] sm:$0xff]
      %v436 = vld [vmem:[%s217 + $0x618] sm:$0xff]
      %v437 = vld [vmem:[%s217 + $0x620] sm:$0xff]
      %v438 = vld [vmem:[%s217 + $0x628] sm:$0xff]
      %v439 = vld [vmem:[%s217 + $0x630] sm:$0xff]
      %v440 = vld [vmem:[%s217 + $0x638] sm:$0xff]
      %v441 = vld [vmem:[%s217 + $0x640] sm:$0xff]
      %v442 = vld [vmem:[%s217 + $0x648] sm:$0xff]
      %v443 = vld [vmem:[%s217 + $0x650] sm:$0xff]
      %v444 = vld [vmem:[%s222] sm:$0xff]
      %v445 = vld [vmem:[%s222 + $0x8] sm:$0xff]
      %v446 = vld [vmem:[%s222 + $0x10] sm:$0xff]
      %v447 = vld [vmem:[%s222 + $0x18] sm:$0xff]
      %v448 = vld [vmem:[%s222 + $0x20] sm:$0xff]
      %v449 = vld [vmem:[%s222 + $0x28] sm:$0xff]
      %v450 = vld [vmem:[%s222 + $0x30] sm:$0xff]
      %v451 = vld [vmem:[%s222 + $0x38] sm:$0xff]
      %v452 = vld [vmem:[%s222 + $0x40] sm:$0xff]
      %v453 = vld [vmem:[%s222 + $0x48] sm:$0xff]
      %v454 = vld [vmem:[%s222 + $0x50] sm:$0xff]
      %v455 = vld [vmem:[%s222 + $0x58] sm:$0xff]
      %v456 = vld [vmem:[%s222 + $0x60] sm:$0xff]
      %v457 = vld [vmem:[%s222 + $0x68] sm:$0xff]
      %v458 = vld [vmem:[%s222 + $0x70] sm:$0xff]
      %v459 = vld [vmem:[%s222 + $0x78] sm:$0xff]
      %v460 = vld [vmem:[%s222 + $0x80] sm:$0xff]
      %v461 = vld [vmem:[%s222 + $0x88] sm:$0xff]
      %v462 = vld [vmem:[%s222 + $0x90] sm:$0xff]
      %v463 = vld [vmem:[%s222 + $0x98] sm:$0xff]
      %v464 = vld [vmem:[%s222 + $0xa0] sm:$0xff]
      %v465 = vld [vmem:[%s222 + $0xa8] sm:$0xff]
      %v466 = vld [vmem:[%s222 + $0xb0] sm:$0xff]
      %v467 = vld [vmem:[%s222 + $0xb8] sm:$0xff]
      %v468 = vld [vmem:[%s222 + $0xc0] sm:$0xff]
      %v469 = vld [vmem:[%s222 + $0xc8] sm:$0xff]
      %v470 = vld [vmem:[%s222 + $0xd0] sm:$0xff]
      %v471 = vld [vmem:[%s222 + $0xd8] sm:$0xff]
      %v472 = vld [vmem:[%s222 + $0xe0] sm:$0xff]
      %v473 = vld [vmem:[%s222 + $0xe8] sm:$0xff]
      %v474 = vld [vmem:[%s222 + $0xf0] sm:$0xff]
      %v475 = vld [vmem:[%s222 + $0xf8] sm:$0xff]
      %v476 = vld [vmem:[%s222 + $0x100] sm:$0xff]
      %v477 = vld [vmem:[%s222 + $0x108] sm:$0xff]
      %v478 = vld [vmem:[%s222 + $0x110] sm:$0xff]
      %v479 = vld [vmem:[%s222 + $0x118] sm:$0xff]
      %v480 = vld [vmem:[%s222 + $0x120] sm:$0xff]
      %v481 = vld [vmem:[%s222 + $0x128] sm:$0xff]
      %v482 = vld [vmem:[%s222 + $0x130] sm:$0xff]
      %v483 = vld [vmem:[%s222 + $0x138] sm:$0xff]
      %v484 = vld [vmem:[%s222 + $0x140] sm:$0xff]
      %v485 = vld [vmem:[%s222 + $0x148] sm:$0xff]
      %v486 = vld [vmem:[%s222 + $0x150] sm:$0xff]
      %v487 = vld [vmem:[%s222 + $0x158] sm:$0xff]
      %v488 = vld [vmem:[%s222 + $0x160] sm:$0xff]
      %v489 = vld [vmem:[%s222 + $0x168] sm:$0xff]
      %v490 = vld [vmem:[%s222 + $0x170] sm:$0xff]
      %v491 = vld [vmem:[%s222 + $0x178] sm:$0xff]
      %v492 = vld [vmem:[%s222 + $0x180] sm:$0xff]
      %v493 = vld [vmem:[%s222 + $0x188] sm:$0xff]
      %v494 = vld [vmem:[%s222 + $0x190] sm:$0xff]
      %v495 = vld [vmem:[%s222 + $0x198] sm:$0xff]
      %v496 = vld [vmem:[%s222 + $0x1a0] sm:$0xff]
      %v497 = vld [vmem:[%s222 + $0x1a8] sm:$0xff]
      %v498 = vld [vmem:[%s222 + $0x1b0] sm:$0xff]
      %v499 = vld [vmem:[%s222 + $0x1b8] sm:$0xff]
      %v500 = vld [vmem:[%s222 + $0x1c0] sm:$0xff]
      %v501 = vld [vmem:[%s222 + $0x1c8] sm:$0xff]
      %v502 = vld [vmem:[%s222 + $0x1d0] sm:$0xff]
      %v503 = vld [vmem:[%s222 + $0x1d8] sm:$0xff]
      %v504 = vld [vmem:[%s222 + $0x1e0] sm:$0xff]
      %v505 = vld [vmem:[%s222 + $0x1e8] sm:$0xff]
      %v506 = vld [vmem:[%s222 + $0x1f0] sm:$0xff]
      %v507 = vld [vmem:[%s222 + $0x1f8] sm:$0xff]
      %v508 = vld [vmem:[%s222 + $0x200] sm:$0xff]
      %v509 = vld [vmem:[%s222 + $0x208] sm:$0xff]
      %v510 = vld [vmem:[%s222 + $0x210] sm:$0xff]
      %v511 = vld [vmem:[%s222 + $0x218] sm:$0xff]
      %v512 = vld [vmem:[%s222 + $0x220] sm:$0xff]
      %v513 = vld [vmem:[%s222 + $0x228] sm:$0xff]
      %v514 = vld [vmem:[%s222 + $0x230] sm:$0xff]
      %v515 = vld [vmem:[%s222 + $0x238] sm:$0xff]
      %v516 = vld [vmem:[%s222 + $0x240] sm:$0xff]
      %v517 = vld [vmem:[%s222 + $0x248] sm:$0xff]
      %v518 = vld [vmem:[%s222 + $0x250] sm:$0xff]
      %v519 = vld [vmem:[%s222 + $0x258] sm:$0xff]
      %v520 = vld [vmem:[%s222 + $0x260] sm:$0xff]
      %v521 = vld [vmem:[%s222 + $0x268] sm:$0xff]
      %v522 = vld [vmem:[%s222 + $0x270] sm:$0xff]
      %v523 = vld [vmem:[%s222 + $0x278] sm:$0xff]
      %v524 = vld [vmem:[%s222 + $0x280] sm:$0xff]
      %v525 = vld [vmem:[%s222 + $0x288] sm:$0xff]
      %v526 = vld [vmem:[%s222 + $0x290] sm:$0xff]
      %v527 = vld [vmem:[%s222 + $0x298] sm:$0xff]
      %v528 = vld [vmem:[%s222 + $0x2a0] sm:$0xff]
      %v529 = vld [vmem:[%s222 + $0x2a8] sm:$0xff]
      %v530 = vld [vmem:[%s222 + $0x2b0] sm:$0xff]
      %v531 = vld [vmem:[%s222 + $0x2b8] sm:$0xff]
      %v532 = vld [vmem:[%s222 + $0x2c0] sm:$0xff]
      %v533 = vld [vmem:[%s222 + $0x2c8] sm:$0xff]
      %v534 = vld [vmem:[%s222 + $0x2d0] sm:$0xff]
      %v535 = vld [vmem:[%s222 + $0x2d8] sm:$0xff]
      %v536 = vld [vmem:[%s222 + $0x2e0] sm:$0xff]
      %v537 = vld [vmem:[%s222 + $0x2e8] sm:$0xff]
      %v538 = vld [vmem:[%s222 + $0x2f0] sm:$0xff]
      %v539 = vld [vmem:[%s222 + $0x2f8] sm:$0xff]
      %v540 = vld [vmem:[%s222 + $0x300] sm:$0xff]
      %v541 = vld [vmem:[%s222 + $0x308] sm:$0xff]
      %v542 = vld [vmem:[%s222 + $0x310] sm:$0xff]
      %v543 = vld [vmem:[%s222 + $0x318] sm:$0xff]
      %v544 = vld [vmem:[%s222 + $0x320] sm:$0xff]
      %v545 = vld [vmem:[%s222 + $0x328] sm:$0xff]
      %v546 = vld [vmem:[%s222 + $0x330] sm:$0xff]
      %v547 = vld [vmem:[%s222 + $0x338] sm:$0xff]
      %v548 = vld [vmem:[%s222 + $0x340] sm:$0xff]
      %v549 = vld [vmem:[%s222 + $0x348] sm:$0xff]
      %v550 = vld [vmem:[%s222 + $0x350] sm:$0xff]
      %v551 = vld [vmem:[%s222 + $0x358] sm:$0xff]
      %v552 = vld [vmem:[%s222 + $0x360] sm:$0xff]
      %v553 = vld [vmem:[%s222 + $0x368] sm:$0xff]
      %v554 = vld [vmem:[%s222 + $0x370] sm:$0xff]
      %v555 = vld [vmem:[%s222 + $0x378] sm:$0xff]
      %v556 = vld [vmem:[%s222 + $0x380] sm:$0xff]
      %v557 = vld [vmem:[%s222 + $0x388] sm:$0xff]
      %v558 = vld [vmem:[%s222 + $0x390] sm:$0xff]
      %v559 = vld [vmem:[%s222 + $0x398] sm:$0xff]
      %v560 = vld [vmem:[%s222 + $0x3a0] sm:$0xff]
      %v561 = vld [vmem:[%s222 + $0x3a8] sm:$0xff]
      %v562 = vld [vmem:[%s222 + $0x3b0] sm:$0xff]
      %v563 = vld [vmem:[%s222 + $0x3b8] sm:$0xff]
      %v564 = vld [vmem:[%s222 + $0x3c0] sm:$0xff]
      %v565 = vld [vmem:[%s222 + $0x3c8] sm:$0xff]
      %v566 = vld [vmem:[%s222 + $0x3d0] sm:$0xff]
      %v567 = vld [vmem:[%s222 + $0x3d8] sm:$0xff]
      %v568 = vld [vmem:[%s222 + $0x3e0] sm:$0xff]
      %v569 = vld [vmem:[%s222 + $0x3e8] sm:$0xff]
      %v570 = vld [vmem:[%s222 + $0x3f0] sm:$0xff]
      %v571 = vld [vmem:[%s222 + $0x3f8] sm:$0xff]
      %v572 = vld [vmem:[%s222 + $0x400] sm:$0xff]
      %v573 = vld [vmem:[%s222 + $0x408] sm:$0xff]
      %v574 = vld [vmem:[%s222 + $0x410] sm:$0xff]
      %v575 = vld [vmem:[%s222 + $0x418] sm:$0xff]
      %v576 = vld [vmem:[%s222 + $0x420] sm:$0xff]
      %v577 = vld [vmem:[%s222 + $0x428] sm:$0xff]
      %v578 = vld [vmem:[%s222 + $0x430] sm:$0xff]
      %v579 = vld [vmem:[%s222 + $0x438] sm:$0xff]
      %v580 = vld [vmem:[%s222 + $0x440] sm:$0xff]
      %v581 = vld [vmem:[%s222 + $0x448] sm:$0xff]
      %v582 = vld [vmem:[%s222 + $0x450] sm:$0xff]
      %v583 = vld [vmem:[%s222 + $0x458] sm:$0xff]
      %v584 = vld [vmem:[%s222 + $0x460] sm:$0xff]
      %v585 = vld [vmem:[%s222 + $0x468] sm:$0xff]
      %v586 = vld [vmem:[%s222 + $0x470] sm:$0xff]
      %v587 = vld [vmem:[%s222 + $0x478] sm:$0xff]
      %v588 = vld [vmem:[%s222 + $0x480] sm:$0xff]
      %v589 = vld [vmem:[%s222 + $0x488] sm:$0xff]
      %v590 = vld [vmem:[%s222 + $0x490] sm:$0xff]
      %v591 = vld [vmem:[%s222 + $0x498] sm:$0xff]
      %v592 = vld [vmem:[%s222 + $0x4a0] sm:$0xff]
      %v593 = vld [vmem:[%s222 + $0x4a8] sm:$0xff]
      %v594 = vld [vmem:[%s222 + $0x4b0] sm:$0xff]
      %v595 = vld [vmem:[%s222 + $0x4b8] sm:$0xff]
      %v596 = vld [vmem:[%s222 + $0x4c0] sm:$0xff]
      %v597 = vld [vmem:[%s222 + $0x4c8] sm:$0xff]
      %v598 = vld [vmem:[%s222 + $0x4d0] sm:$0xff]
      %v599 = vld [vmem:[%s222 + $0x4d8] sm:$0xff]
      %v600 = vld [vmem:[%s222 + $0x4e0] sm:$0xff]
      %v601 = vld [vmem:[%s222 + $0x4e8] sm:$0xff]
      %v602 = vld [vmem:[%s222 + $0x4f0] sm:$0xff]
      %v603 = vld [vmem:[%s222 + $0x4f8] sm:$0xff]
      %v604 = vld [vmem:[%s222 + $0x500] sm:$0xff]
      %v605 = vld [vmem:[%s222 + $0x508] sm:$0xff]
      %v606 = vld [vmem:[%s222 + $0x510] sm:$0xff]
      %v607 = vld [vmem:[%s222 + $0x518] sm:$0xff]
      %v608 = vld [vmem:[%s222 + $0x520] sm:$0xff]
      %v609 = vld [vmem:[%s222 + $0x528] sm:$0xff]
      %v610 = vld [vmem:[%s222 + $0x530] sm:$0xff]
      %v611 = vld [vmem:[%s222 + $0x538] sm:$0xff]
      %v612 = vld [vmem:[%s222 + $0x540] sm:$0xff]
      %v613 = vld [vmem:[%s222 + $0x548] sm:$0xff]
      %v614 = vld [vmem:[%s222 + $0x550] sm:$0xff]
      %v615 = vld [vmem:[%s222 + $0x558] sm:$0xff]
      %v616 = vld [vmem:[%s222 + $0x560] sm:$0xff]
      %v617 = vld [vmem:[%s222 + $0x568] sm:$0xff]
      %v618 = vld [vmem:[%s222 + $0x570] sm:$0xff]
      %v619 = vld [vmem:[%s222 + $0x578] sm:$0xff]
      %v620 = vld [vmem:[%s222 + $0x580] sm:$0xff]
      %v621 = vld [vmem:[%s222 + $0x588] sm:$0xff]
      %v622 = vld [vmem:[%s222 + $0x590] sm:$0xff]
      %v623 = vld [vmem:[%s222 + $0x598] sm:$0xff]
      %v624 = vld [vmem:[%s222 + $0x5a0] sm:$0xff]
      %v625 = vld [vmem:[%s222 + $0x5a8] sm:$0xff]
      %v626 = vld [vmem:[%s222 + $0x5b0] sm:$0xff]
      %v627 = vld [vmem:[%s222 + $0x5b8] sm:$0xff]
      %v628 = vld [vmem:[%s222 + $0x5c0] sm:$0xff]
      %v629 = vld [vmem:[%s222 + $0x5c8] sm:$0xff]
      %v630 = vld [vmem:[%s222 + $0x5d0] sm:$0xff]
      %v631 = vld [vmem:[%s222 + $0x5d8] sm:$0xff]
      %v632 = vld [vmem:[%s222 + $0x5e0] sm:$0xff]
      %v633 = vld [vmem:[%s222 + $0x5e8] sm:$0xff]
      %v634 = vld [vmem:[%s222 + $0x5f0] sm:$0xff]
      %v635 = vld [vmem:[%s222 + $0x5f8] sm:$0xff]
      %v636 = vld [vmem:[%s222 + $0x600] sm:$0xff]
      %v637 = vld [vmem:[%s222 + $0x608] sm:$0xff]
      %v638 = vld [vmem:[%s222 + $0x610] sm:$0xff]
      %v639 = vld [vmem:[%s222 + $0x618] sm:$0xff]
      %v640 = vld [vmem:[%s222 + $0x620] sm:$0xff]
      %v641 = vld [vmem:[%s222 + $0x628] sm:$0xff]
      %v642 = vld [vmem:[%s222 + $0x630] sm:$0xff]
      %v643 = vld [vmem:[%s222 + $0x638] sm:$0xff]
      %v644 = vld [vmem:[%s222 + $0x640] sm:$0xff]
      %v645 = vld [vmem:[%s222 + $0x648] sm:$0xff]
      %v646 = vld [vmem:[%s222 + $0x650] sm:$0xff]
      %v647 = vadd.f32 %v241, %v444
      %v648 = vadd.f32 %v242, %v445
      %v649 = vadd.f32 %v243, %v446
      %v650 = vadd.f32 %v244, %v447
      %v651 = vadd.f32 %v245, %v448
      %v652 = vadd.f32 %v246, %v449
      %v653 = vadd.f32 %v247, %v450
      %v654 = vadd.f32 %v248, %v451
      %v655 = vadd.f32 %v249, %v452
      %v656 = vadd.f32 %v250, %v453
      %v657 = vadd.f32 %v251, %v454
      %v658 = vadd.f32 %v252, %v455
      %v659 = vadd.f32 %v253, %v456
      %v660 = vadd.f32 %v254, %v457
      %v661 = vadd.f32 %v255, %v458
      %v662 = vadd.f32 %v256, %v459
      %v663 = vadd.f32 %v257, %v460
      %v664 = vadd.f32 %v258, %v461
      %v665 = vadd.f32 %v259, %v462
      %v666 = vadd.f32 %v260, %v463
      %v667 = vadd.f32 %v261, %v464
      %v668 = vadd.f32 %v262, %v465
      %v669 = vadd.f32 %v263, %v466
      %v670 = vadd.f32 %v264, %v467
      %v671 = vadd.f32 %v265, %v468
      %v672 = vadd.f32 %v266, %v469
      %v673 = vadd.f32 %v267, %v470
      %v674 = vadd.f32 %v268, %v471
      %v675 = vadd.f32 %v269, %v472
      %v676 = vadd.f32 %v270, %v473
      %v677 = vadd.f32 %v271, %v474
      %v678 = vadd.f32 %v272, %v475
      %v679 = vadd.f32 %v273, %v476
      %v680 = vadd.f32 %v274, %v477
      %v681 = vadd.f32 %v275, %v478
      %v682 = vadd.f32 %v276, %v479
      %v683 = vadd.f32 %v277, %v480
      %v684 = vadd.f32 %v278, %v481
      %v685 = vadd.f32 %v279, %v482
      %v686 = vadd.f32 %v280, %v483
      %v687 = vadd.f32 %v281, %v484
      %v688 = vadd.f32 %v282, %v485
      %v689 = vadd.f32 %v283, %v486
      %v690 = vadd.f32 %v284, %v487
      %v691 = vadd.f32 %v285, %v488
      %v692 = vadd.f32 %v286, %v489
      %v693 = vadd.f32 %v287, %v490
      %v694 = vadd.f32 %v288, %v491
      %v695 = vadd.f32 %v289, %v492
      %v696 = vadd.f32 %v290, %v493
      %v697 = vadd.f32 %v291, %v494
      %v698 = vadd.f32 %v292, %v495
      %v699 = vadd.f32 %v293, %v496
      %v700 = vadd.f32 %v294, %v497
      %v701 = vadd.f32 %v295, %v498
      %v702 = vadd.f32 %v296, %v499
      %v703 = vadd.f32 %v297, %v500
      %v704 = vadd.f32 %v298, %v501
      %v705 = vadd.f32 %v299, %v502
      %v706 = vadd.f32 %v300, %v503
      %v707 = vadd.f32 %v301, %v504
      %v708 = vadd.f32 %v302, %v505
      %v709 = vadd.f32 %v303, %v506
      %v710 = vadd.f32 %v304, %v507
      %v711 = vadd.f32 %v305, %v508
      %v712 = vadd.f32 %v306, %v509
      %v713 = vadd.f32 %v307, %v510
      %v714 = vadd.f32 %v308, %v511
      %v715 = vadd.f32 %v309, %v512
      %v716 = vadd.f32 %v310, %v513
      %v717 = vadd.f32 %v311, %v514
      %v718 = vadd.f32 %v312, %v515
      %v719 = vadd.f32 %v313, %v516
      %v720 = vadd.f32 %v314, %v517
      %v721 = vadd.f32 %v315, %v518
      %v722 = vadd.f32 %v316, %v519
      %v723 = vadd.f32 %v317, %v520
      %v724 = vadd.f32 %v318, %v521
      %v725 = vadd.f32 %v319, %v522
      %v726 = vadd.f32 %v320, %v523
      %v727 = vadd.f32 %v321, %v524
      %v728 = vadd.f32 %v322, %v525
      %v729 = vadd.f32 %v323, %v526
      %v730 = vadd.f32 %v324, %v527
      %v731 = vadd.f32 %v325, %v528
      %v732 = vadd.f32 %v326, %v529
      %v733 = vadd.f32 %v327, %v530
      %v734 = vadd.f32 %v328, %v531
      %v735 = vadd.f32 %v329, %v532
      %v736 = vadd.f32 %v330, %v533
      %v737 = vadd.f32 %v331, %v534
      %v738 = vadd.f32 %v332, %v535
      %v739 = vadd.f32 %v333, %v536
      %v740 = vadd.f32 %v334, %v537
      %v741 = vadd.f32 %v335, %v538
      %v742 = vadd.f32 %v336, %v539
      %v743 = vadd.f32 %v337, %v540
      %v744 = vadd.f32 %v338, %v541
      %v745 = vadd.f32 %v339, %v542
      %v746 = vadd.f32 %v340, %v543
      %v747 = vadd.f32 %v341, %v544
      %v748 = vadd.f32 %v342, %v545
      %v749 = vadd.f32 %v343, %v546
      %v750 = vadd.f32 %v344, %v547
      %v751 = vadd.f32 %v345, %v548
      %v752 = vadd.f32 %v346, %v549
      %v753 = vadd.f32 %v347, %v550
      %v754 = vadd.f32 %v348, %v551
      %v755 = vadd.f32 %v349, %v552
      %v756 = vadd.f32 %v350, %v553
      %v757 = vadd.f32 %v351, %v554
      %v758 = vadd.f32 %v352, %v555
      %v759 = vadd.f32 %v353, %v556
      %v760 = vadd.f32 %v354, %v557
      %v761 = vadd.f32 %v355, %v558
      %v762 = vadd.f32 %v356, %v559
      %v763 = vadd.f32 %v357, %v560
      %v764 = vadd.f32 %v358, %v561
      %v765 = vadd.f32 %v359, %v562
      %v766 = vadd.f32 %v360, %v563
      %v767 = vadd.f32 %v361, %v564
      %v768 = vadd.f32 %v362, %v565
      %v769 = vadd.f32 %v363, %v566
      %v770 = vadd.f32 %v364, %v567
      %v771 = vadd.f32 %v365, %v568
      %v772 = vadd.f32 %v366, %v569
      %v773 = vadd.f32 %v367, %v570
      %v774 = vadd.f32 %v368, %v571
      %v775 = vadd.f32 %v369, %v572
      %v776 = vadd.f32 %v370, %v573
      %v777 = vadd.f32 %v371, %v574
      %v778 = vadd.f32 %v372, %v575
      %v779 = vadd.f32 %v373, %v576
      %v780 = vadd.f32 %v374, %v577
      %v781 = vadd.f32 %v375, %v578
      %v782 = vadd.f32 %v376, %v579
      %v783 = vadd.f32 %v377, %v580
      %v784 = vadd.f32 %v378, %v581
      %v785 = vadd.f32 %v379, %v582
      %v786 = vadd.f32 %v380, %v583
      %v787 = vadd.f32 %v381, %v584
      %v788 = vadd.f32 %v382, %v585
      %v789 = vadd.f32 %v383, %v586
      %v790 = vadd.f32 %v384, %v587
      %v791 = vadd.f32 %v385, %v588
      %v792 = vadd.f32 %v386, %v589
      %v793 = vadd.f32 %v387, %v590
      %v794 = vadd.f32 %v388, %v591
      %v795 = vadd.f32 %v389, %v592
      %v796 = vadd.f32 %v390, %v593
      %v797 = vadd.f32 %v391, %v594
      %v798 = vadd.f32 %v392, %v595
      %v799 = vadd.f32 %v393, %v596
      %v800 = vadd.f32 %v394, %v597
      %v801 = vadd.f32 %v395, %v598
      %v802 = vadd.f32 %v396, %v599
      %v803 = vadd.f32 %v397, %v600
      %v804 = vadd.f32 %v398, %v601
      %v805 = vadd.f32 %v399, %v602
      %v806 = vadd.f32 %v400, %v603
      %v807 = vadd.f32 %v401, %v604
      %v808 = vadd.f32 %v402, %v605
      %v809 = vadd.f32 %v403, %v606
      %v810 = vadd.f32 %v404, %v607
      %v811 = vadd.f32 %v405, %v608
      %v812 = vadd.f32 %v406, %v609
      %v813 = vadd.f32 %v407, %v610
      %v814 = vadd.f32 %v408, %v611
      %v815 = vadd.f32 %v409, %v612
      %v816 = vadd.f32 %v410, %v613
      %v817 = vadd.f32 %v411, %v614
      %v818 = vadd.f32 %v412, %v615
      %v819 = vadd.f32 %v413, %v616
      %v820 = vadd.f32 %v414, %v617
      %v821 = vadd.f32 %v415, %v618
      %v822 = vadd.f32 %v416, %v619
      %v823 = vadd.f32 %v417, %v620
      %v824 = vadd.f32 %v418, %v621
      %v825 = vadd.f32 %v419, %v622
      %v826 = vadd.f32 %v420, %v623
      %v827 = vadd.f32 %v421, %v624
      %v828 = vadd.f32 %v422, %v625
      %v829 = vadd.f32 %v423, %v626
      %v830 = vadd.f32 %v424, %v627
      %v831 = vadd.f32 %v425, %v628
      %v832 = vadd.f32 %v426, %v629
      %v833 = vadd.f32 %v427, %v630
      %v834 = vadd.f32 %v428, %v631
      %v835 = vadd.f32 %v429, %v632
      %v836 = vadd.f32 %v430, %v633
      %v837 = vadd.f32 %v431, %v634
      %v838 = vadd.f32 %v432, %v635
      %v839 = vadd.f32 %v433, %v636
      %v840 = vadd.f32 %v434, %v637
      %v841 = vadd.f32 %v435, %v638
      %v842 = vadd.f32 %v436, %v639
      %v843 = vadd.f32 %v437, %v640
      %v844 = vadd.f32 %v438, %v641
      %v845 = vadd.f32 %v439, %v642
      %v846 = vadd.f32 %v440, %v643
      %v847 = vadd.f32 %v441, %v644
      %v848 = vadd.f32 %v442, %v645
      %v849 = vadd.f32 %v443, %v646
      %v850 = vmax.f32 %v647, 0.0
      %v851 = vmax.f32 %v648, 0.0
      %v852 = vmax.f32 %v649, 0.0
      %v853 = vmax.f32 %v650, 0.0
      %v854 = vmax.f32 %v651, 0.0
      %v855 = vmax.f32 %v652, 0.0
      %v856 = vmax.f32 %v653, 0.0
      %v857 = vmax.f32 %v654, 0.0
      %v858 = vmax.f32 %v655, 0.0
      %v859 = vmax.f32 %v656, 0.0
      %v860 = vmax.f32 %v657, 0.0
      %v861 = vmax.f32 %v658, 0.0
      %v862 = vmax.f32 %v659, 0.0
      %v863 = vmax.f32 %v660, 0.0
      %v864 = vmax.f32 %v661, 0.0
      %v865 = vmax.f32 %v662, 0.0
      %v866 = vmax.f32 %v663, 0.0
      %v867 = vmax.f32 %v664, 0.0
      %v868 = vmax.f32 %v665, 0.0
      %v869 = vmax.f32 %v666, 0.0
      %v870 = vmax.f32 %v667, 0.0
      %v871 = vmax.f32 %v668, 0.0
      %v872 = vmax.f32 %v669, 0.0
      %v873 = vmax.f32 %v670, 0.0
      %v874 = vmax.f32 %v671, 0.0
      %v875 = vmax.f32 %v672, 0.0
      %v876 = vmax.f32 %v673, 0.0
      %v877 = vmax.f32 %v674, 0.0
      %v878 = vmax.f32 %v675, 0.0
      %v879 = vmax.f32 %v676, 0.0
      %v880 = vmax.f32 %v677, 0.0
      %v881 = vmax.f32 %v678, 0.0
      %v882 = vmax.f32 %v679, 0.0
      %v883 = vmax.f32 %v680, 0.0
      %v884 = vmax.f32 %v681, 0.0
      %v885 = vmax.f32 %v682, 0.0
      %v886 = vmax.f32 %v683, 0.0
      %v887 = vmax.f32 %v684, 0.0
      %v888 = vmax.f32 %v685, 0.0
      %v889 = vmax.f32 %v686, 0.0
      %v890 = vmax.f32 %v687, 0.0
      %v891 = vmax.f32 %v688, 0.0
      %v892 = vmax.f32 %v689, 0.0
      %v893 = vmax.f32 %v690, 0.0
      %v894 = vmax.f32 %v691, 0.0
      %v895 = vmax.f32 %v692, 0.0
      %v896 = vmax.f32 %v693, 0.0
      %v897 = vmax.f32 %v694, 0.0
      %v898 = vmax.f32 %v695, 0.0
      %v899 = vmax.f32 %v696, 0.0
      %v900 = vmax.f32 %v697, 0.0
      %v901 = vmax.f32 %v698, 0.0
      %v902 = vmax.f32 %v699, 0.0
      %v903 = vmax.f32 %v700, 0.0
      %v904 = vmax.f32 %v701, 0.0
      %v905 = vmax.f32 %v702, 0.0
      %v906 = vmax.f32 %v703, 0.0
      %v907 = vmax.f32 %v704, 0.0
      %v908 = vmax.f32 %v705, 0.0
      %v909 = vmax.f32 %v706, 0.0
      %v910 = vmax.f32 %v707, 0.0
      %v911 = vmax.f32 %v708, 0.0
      %v912 = vmax.f32 %v709, 0.0
      %v913 = vmax.f32 %v710, 0.0
      %v914 = vmax.f32 %v711, 0.0
      %v915 = vmax.f32 %v712, 0.0
      %v916 = vmax.f32 %v713, 0.0
      %v917 = vmax.f32 %v714, 0.0
      %v918 = vmax.f32 %v715, 0.0
      %v919 = vmax.f32 %v716, 0.0
      %v920 = vmax.f32 %v717, 0.0
      %v921 = vmax.f32 %v718, 0.0
      %v922 = vmax.f32 %v719, 0.0
      %v923 = vmax.f32 %v720, 0.0
      %v924 = vmax.f32 %v721, 0.0
      %v925 = vmax.f32 %v722, 0.0
      %v926 = vmax.f32 %v723, 0.0
      %v927 = vmax.f32 %v724, 0.0
      %v928 = vmax.f32 %v725, 0.0
      %v929 = vmax.f32 %v726, 0.0
      %v930 = vmax.f32 %v727, 0.0
      %v931 = vmax.f32 %v728, 0.0
      %v932 = vmax.f32 %v729, 0.0
      %v933 = vmax.f32 %v730, 0.0
      %v934 = vmax.f32 %v731, 0.0
      %v935 = vmax.f32 %v732, 0.0
      %v936 = vmax.f32 %v733, 0.0
      %v937 = vmax.f32 %v734, 0.0
      %v938 = vmax.f32 %v735, 0.0
      %v939 = vmax.f32 %v736, 0.0
      %v940 = vmax.f32 %v737, 0.0
      %v941 = vmax.f32 %v738, 0.0
      %v942 = vmax.f32 %v739, 0.0
      %v943 = vmax.f32 %v740, 0.0
      %v944 = vmax.f32 %v741, 0.0
      %v945 = vmax.f32 %v742, 0.0
      %v946 = vmax.f32 %v743, 0.0
      %v947 = vmax.f32 %v744, 0.0
      %v948 = vmax.f32 %v745, 0.0
      %v949 = vmax.f32 %v746, 0.0
      %v950 = vmax.f32 %v747, 0.0
      %v951 = vmax.f32 %v748, 0.0
      %v952 = vmax.f32 %v749, 0.0
      %v953 = vmax.f32 %v750, 0.0
      %v954 = vmax.f32 %v751, 0.0
      %v955 = vmax.f32 %v752, 0.0
      %v956 = vmax.f32 %v753, 0.0
      %v957 = vmax.f32 %v754, 0.0
      %v958 = vmax.f32 %v755, 0.0
      %v959 = vmax.f32 %v756, 0.0
      %v960 = vmax.f32 %v757, 0.0
      %v961 = vmax.f32 %v758, 0.0
      %v962 = vmax.f32 %v759, 0.0
      %v963 = vmax.f32 %v760, 0.0
      %v964 = vmax.f32 %v761, 0.0
      %v965 = vmax.f32 %v762, 0.0
      %v966 = vmax.f32 %v763, 0.0
      %v967 = vmax.f32 %v764, 0.0
      %v968 = vmax.f32 %v765, 0.0
      %v969 = vmax.f32 %v766, 0.0
      %v970 = vmax.f32 %v767, 0.0
      %v971 = vmax.f32 %v768, 0.0
      %v972 = vmax.f32 %v769, 0.0
      %v973 = vmax.f32 %v770, 0.0
      %v974 = vmax.f32 %v771, 0.0
      %v975 = vmax.f32 %v772, 0.0
      %v976 = vmax.f32 %v773, 0.0
      %v977 = vmax.f32 %v774, 0.0
      %v978 = vmax.f32 %v775, 0.0
      %v979 = vmax.f32 %v776, 0.0
      %v980 = vmax.f32 %v777, 0.0
      %v981 = vmax.f32 %v778, 0.0
      %v982 = vmax.f32 %v779, 0.0
      %v983 = vmax.f32 %v780, 0.0
      %v984 = vmax.f32 %v781, 0.0
      %v985 = vmax.f32 %v782, 0.0
      %v986 = vmax.f32 %v783, 0.0
      %v987 = vmax.f32 %v784, 0.0
      %v988 = vmax.f32 %v785, 0.0
      %v989 = vmax.f32 %v786, 0.0
      %v990 = vmax.f32 %v787, 0.0
      %v991 = vmax.f32 %v788, 0.0
      %v992 = vmax.f32 %v789, 0.0
      %v993 = vmax.f32 %v790, 0.0
      %v994 = vmax.f32 %v791, 0.0
      %v995 = vmax.f32 %v792, 0.0
      %v996 = vmax.f32 %v793, 0.0
      %v997 = vmax.f32 %v794, 0.0
      %v998 = vmax.f32 %v795, 0.0
      %v999 = vmax.f32 %v796, 0.0
      %v1000 = vmax.f32 %v797, 0.0
      %v1001 = vmax.f32 %v798, 0.0
      %v1002 = vmax.f32 %v799, 0.0
      %v1003 = vmax.f32 %v800, 0.0
      %v1004 = vmax.f32 %v801, 0.0
      %v1005 = vmax.f32 %v802, 0.0
      %v1006 = vmax.f32 %v803, 0.0
      %v1007 = vmax.f32 %v804, 0.0
      %v1008 = vmax.f32 %v805, 0.0
      %v1009 = vmax.f32 %v806, 0.0
      %v1010 = vmax.f32 %v807, 0.0
      %v1011 = vmax.f32 %v808, 0.0
      %v1012 = vmax.f32 %v809, 0.0
      %v1013 = vmax.f32 %v810, 0.0
      %v1014 = vmax.f32 %v811, 0.0
      %v1015 = vmax.f32 %v812, 0.0
      %v1016 = vmax.f32 %v813, 0.0
      %v1017 = vmax.f32 %v814, 0.0
      %v1018 = vmax.f32 %v815, 0.0
      %v1019 = vmax.f32 %v816, 0.0
      %v1020 = vmax.f32 %v817, 0.0
      %v1021 = vmax.f32 %v818, 0.0
      %v1022 = vmax.f32 %v819, 0.0
      %v1023 = vmax.f32 %v820, 0.0
      %v1024 = vmax.f32 %v821, 0.0
      %v1025 = vmax.f32 %v822, 0.0
      %v1026 = vmax.f32 %v823, 0.0
      %v1027 = vmax.f32 %v824, 0.0
      %v1028 = vmax.f32 %v825, 0.0
      %v1029 = vmax.f32 %v826, 0.0
      %v1030 = vmax.f32 %v827, 0.0
      %v1031 = vmax.f32 %v828, 0.0
      %v1032 = vmax.f32 %v829, 0.0
      %v1033 = vmax.f32 %v830, 0.0
      %v1034 = vmax.f32 %v831, 0.0
      %v1035 = vmax.f32 %v832, 0.0
      %v1036 = vmax.f32 %v833, 0.0
      %v1037 = vmax.f32 %v834, 0.0
      %v1038 = vmax.f32 %v835, 0.0
      %v1039 = vmax.f32 %v836, 0.0
      %v1040 = vmax.f32 %v837, 0.0
      %v1041 = vmax.f32 %v838, 0.0
      %v1042 = vmax.f32 %v839, 0.0
      %v1043 = vmax.f32 %v840, 0.0
      %v1044 = vmax.f32 %v841, 0.0
      %v1045 = vmax.f32 %v842, 0.0
      %v1046 = vmax.f32 %v843, 0.0
      %v1047 = vmax.f32 %v844, 0.0
      %v1048 = vmax.f32 %v845, 0.0
      %v1049 = vmax.f32 %v846, 0.0
      %v1050 = vmax.f32 %v847, 0.0
      %v1051 = vmax.f32 %v848, 0.0
      %v1052 = vmax.f32 %v849, 0.0
      %v1053 = vld [vmem:[%s228] sm:$0xff]
      %v1054 = vld [vmem:[%s228 + $0x8] sm:$0xff]
      %v1055 = vld [vmem:[%s228 + $0x10] sm:$0xff]
      %v1056 = vld [vmem:[%s228 + $0x18] sm:$0xff]
      %v1057 = vld [vmem:[%s228 + $0x20] sm:$0xff]
      %v1058 = vld [vmem:[%s228 + $0x28] sm:$0xff]
      %v1059 = vld [vmem:[%s228 + $0x30] sm:$0xff]
      %v1060 = vld [vmem:[%s228 + $0x38] sm:$0xff]
      %v1061 = vld [vmem:[%s228 + $0x40] sm:$0xff]
      %v1062 = vld [vmem:[%s228 + $0x48] sm:$0xff]
      %v1063 = vld [vmem:[%s228 + $0x50] sm:$0xff]
      %v1064 = vld [vmem:[%s228 + $0x58] sm:$0xff]
      %v1065 = vld [vmem:[%s228 + $0x60] sm:$0xff]
      %v1066 = vld [vmem:[%s228 + $0x68] sm:$0xff]
      %v1067 = vld [vmem:[%s228 + $0x70] sm:$0xff]
      %v1068 = vld [vmem:[%s228 + $0x78] sm:$0xff]
      %v1069 = vld [vmem:[%s228 + $0x80] sm:$0xff]
      %v1070 = vld [vmem:[%s228 + $0x88] sm:$0xff]
      %v1071 = vld [vmem:[%s228 + $0x90] sm:$0xff]
      %v1072 = vld [vmem:[%s228 + $0x98] sm:$0xff]
      %v1073 = vld [vmem:[%s228 + $0xa0] sm:$0xff]
      %v1074 = vld [vmem:[%s228 + $0xa8] sm:$0xff]
      %v1075 = vld [vmem:[%s228 + $0xb0] sm:$0xff]
      %v1076 = vld [vmem:[%s228 + $0xb8] sm:$0xff]
      %v1077 = vld [vmem:[%s228 + $0xc0] sm:$0xff]
      %v1078 = vld [vmem:[%s228 + $0xc8] sm:$0xff]
      %v1079 = vld [vmem:[%s228 + $0xd0] sm:$0xff]
      %v1080 = vld [vmem:[%s228 + $0xd8] sm:$0xff]
      %v1081 = vld [vmem:[%s228 + $0xe0] sm:$0xff]
      %v1082 = vld [vmem:[%s228 + $0xe8] sm:$0xff]
      %v1083 = vld [vmem:[%s228 + $0xf0] sm:$0xff]
      %v1084 = vld [vmem:[%s228 + $0xf8] sm:$0xff]
      %v1085 = vld [vmem:[%s228 + $0x100] sm:$0xff]
      %v1086 = vld [vmem:[%s228 + $0x108] sm:$0xff]
      %v1087 = vld [vmem:[%s228 + $0x110] sm:$0xff]
      %v1088 = vld [vmem:[%s228 + $0x118] sm:$0xff]
      %v1089 = vld [vmem:[%s228 + $0x120] sm:$0xff]
      %v1090 = vld [vmem:[%s228 + $0x128] sm:$0xff]
      %v1091 = vld [vmem:[%s228 + $0x130] sm:$0xff]
      %v1092 = vld [vmem:[%s228 + $0x138] sm:$0xff]
      %v1093 = vld [vmem:[%s228 + $0x140] sm:$0xff]
      %v1094 = vld [vmem:[%s228 + $0x148] sm:$0xff]
      %v1095 = vld [vmem:[%s228 + $0x150] sm:$0xff]
      %v1096 = vld [vmem:[%s228 + $0x158] sm:$0xff]
      %v1097 = vld [vmem:[%s228 + $0x160] sm:$0xff]
      %v1098 = vld [vmem:[%s228 + $0x168] sm:$0xff]
      %v1099 = vld [vmem:[%s228 + $0x170] sm:$0xff]
      %v1100 = vld [vmem:[%s228 + $0x178] sm:$0xff]
      %v1101 = vld [vmem:[%s228 + $0x180] sm:$0xff]
      %v1102 = vld [vmem:[%s228 + $0x188] sm:$0xff]
      %v1103 = vld [vmem:[%s228 + $0x190] sm:$0xff]
      %v1104 = vld [vmem:[%s228 + $0x198] sm:$0xff]
      %v1105 = vld [vmem:[%s228 + $0x1a0] sm:$0xff]
      %v1106 = vld [vmem:[%s228 + $0x1a8] sm:$0xff]
      %v1107 = vld [vmem:[%s228 + $0x1b0] sm:$0xff]
      %v1108 = vld [vmem:[%s228 + $0x1b8] sm:$0xff]
      %v1109 = vld [vmem:[%s228 + $0x1c0] sm:$0xff]
      %v1110 = vld [vmem:[%s228 + $0x1c8] sm:$0xff]
      %vm1111 = vcmask 850944
      %v1113 = vsel %vm1111, %v1054, 0
      %v1116 = vsel %vm1111, %v1056, 0
      %v1119 = vsel %vm1111, %v1058, 0
      %v1122 = vsel %vm1111, %v1060, 0
      %v1125 = vsel %vm1111, %v1062, 0
      %v1128 = vsel %vm1111, %v1064, 0
      %v1131 = vsel %vm1111, %v1066, 0
      %v1134 = vsel %vm1111, %v1068, 0
      %v1137 = vsel %vm1111, %v1070, 0
      %v1140 = vsel %vm1111, %v1072, 0
      %v1143 = vsel %vm1111, %v1074, 0
      %v1146 = vsel %vm1111, %v1076, 0
      %v1149 = vsel %vm1111, %v1078, 0
      %v1152 = vsel %vm1111, %v1080, 0
      %v1155 = vsel %vm1111, %v1082, 0
      %v1158 = vsel %vm1111, %v1084, 0
      %v1161 = vsel %vm1111, %v1086, 0
      %v1164 = vsel %vm1111, %v1088, 0
      %v1167 = vsel %vm1111, %v1090, 0
      %v1170 = vsel %vm1111, %v1092, 0
      %v1173 = vsel %vm1111, %v1094, 0
      %v1176 = vsel %vm1111, %v1096, 0
      %v1179 = vsel %vm1111, %v1098, 0
      %v1182 = vsel %vm1111, %v1100, 0
      %v1185 = vsel %vm1111, %v1102, 0
      %v1188 = vsel %vm1111, %v1104, 0
      %v1191 = vsel %vm1111, %v1106, 0
      %v1194 = vsel %vm1111, %v1108, 0
      %v1197 = vsel %vm1111, %v1110, 0
      %1199 = vmatprep.subr.mxu0 %v956
      %1200 = vmatpush1.msra.mxu0 %v955
      %1201 = vmatprep.subr.mxu0 %v949
      %1202 = vmatpush1.msra.mxu0 %v948
      %1203 = vmatprep.subr.mxu0 %v942
      %1204 = vmatpush1.msra.mxu0 %v941
      %1205 = vmatprep.subr.mxu0 %v935
      %1206 = vmatpush1.msra.mxu0 %v934
      %1207 = vmatprep.subr.mxu0 %v928
      %1208 = vmatpush1.msra.mxu0 %v927
      %1209 = vmatprep.subr.mxu0 %v921
      %1210 = vmatpush1.msra.mxu0 %v920
      %1211 = vmatprep.subr.mxu0 %v914
      %1212 = vmatpush1.msra.mxu0 %v913
      %1213 = vmatprep.subr.mxu0 %v907
      %1214 = vmatpush1.msra.mxu0 %v906
      %1215 = vmatprep.subr.mxu0 %v900
      %1216 = vmatpush1.msra.mxu0 %v899
      %1217 = vmatprep.subr.mxu0 %v893
      %1218 = vmatpush1.msra.mxu0 %v892
      %1219 = vmatprep.subr.mxu0 %v886
      %1220 = vmatpush1.msra.mxu0 %v885
      %1221 = vmatprep.subr.mxu0 %v879
      %1222 = vmatpush1.msra.mxu0 %v878
      %1223 = vmatprep.subr.mxu0 %v872
      %1224 = vmatpush1.msra.mxu0 %v871
      %1225 = vmatprep.subr.mxu0 %v865
      %1226 = vmatpush1.msra.mxu0 %v864
      %1227 = vmatprep.subr.mxu0 %v858
      %1228 = vmatpush1.msra.mxu0 %v857
      %1229 = vmatprep.subr.mxu0 %v851
      %1230 = vmatpush1.msra.mxu0 %v850
      %1231 = vmatprep.subr.mxu0 0.0
      %1232 = vmatpush2.msra.mxu0 0.0
      %1233 = vmatprep.subr.mxu0 0.0
      %1234 = vmatpush2.msra.mxu0 0.0
      %1235 = vmatprep.subr.mxu0 0.0
      %1236 = vmatpush2.msra.mxu0 0.0
      %1237 = vmatprep.subr.mxu0 %v1047
      %1238 = vmatpush2.msra.mxu0 %v1046
      %1239 = vmatprep.subr.mxu0 %v1040
      %1240 = vmatpush2.msra.mxu0 %v1039
      %1241 = vmatprep.subr.mxu0 %v1033
      %1242 = vmatpush2.msra.mxu0 %v1032
      %1243 = vmatprep.subr.mxu0 %v1026
      %1244 = vmatpush2.msra.mxu0 %v1025
      %1245 = vmatprep.subr.mxu0 %v1019
      %1246 = vmatpush2.msra.mxu0 %v1018
      %1247 = vmatprep.subr.mxu0 %v1012
      %1248 = vmatpush2.msra.mxu0 %v1011
      %1249 = vmatprep.subr.mxu0 %v1005
      %1250 = vmatpush2.msra.mxu0 %v1004
      %1251 = vmatprep.subr.mxu0 %v998
      %1252 = vmatpush2.msra.mxu0 %v997
      %1253 = vmatprep.subr.mxu0 %v991
      %1254 = vmatpush2.msra.mxu0 %v990
      %1255 = vmatprep.subr.mxu0 %v984
      %1256 = vmatpush2.msra.mxu0 %v983
      %1257 = vmatprep.subr.mxu0 %v977
      %1258 = vmatpush2.msra.mxu0 %v976
      %1259 = vmatprep.subr.mxu0 %v970
      %1260 = vmatpush2.msra.mxu0 %v969
      %1261 = vmatprep.subr.mxu0 %v963
      %1262 = vmatpush2.msra.mxu0 %v962
      %1263 = vmatprep.mubr.f32.mxu0 %v1113
      %1264 = vmatmul.mubr.f32.gmra.mxu0 %v1053
      %v1265 = vpop.f32.mrf.mxu0
      %v1266 = vadd.f32 0.0, %v1265
      %v1267 = vpop.f32.mrf.mxu0
      %v1268 = vadd.f32 0.0, %v1267
      %1269 = vmatprep.mubr.f32.mxu0 %v1116
      %1270 = vmatmul.mubr.f32.gmra.mxu0 %v1055
      %v1271 = vpop.f32.mrf.mxu0
      %v1272 = vadd.f32 0.0, %v1271
      %v1273 = vpop.f32.mrf.mxu0
      %v1274 = vadd.f32 0.0, %v1273
      %1275 = vmatprep.mubr.f32.mxu0 %v1119
      %1276 = vmatmul.mubr.f32.gmra.mxu0 %v1057
      %v1277 = vpop.f32.mrf.mxu0
      %v1278 = vadd.f32 0.0, %v1277
      %v1279 = vpop.f32.mrf.mxu0
      %v1280 = vadd.f32 0.0, %v1279
      %1281 = vmatprep.mubr.f32.mxu0 %v1122
      %1282 = vmatmul.mubr.f32.gmra.mxu0 %v1059
      %v1283 = vpop.f32.mrf.mxu0
      %v1284 = vadd.f32 0.0, %v1283
      %v1285 = vpop.f32.mrf.mxu0
      %v1286 = vadd.f32 0.0, %v1285
      %1287 = vmatprep.mubr.f32.mxu0 %v1125
      %1288 = vmatmul.mubr.f32.gmra.mxu0 %v1061
      %v1289 = vpop.f32.mrf.mxu0
      %v1290 = vadd.f32 0.0, %v1289
      %v1291 = vpop.f32.mrf.mxu0
      %v1292 = vadd.f32 0.0, %v1291
      %1293 = vmatprep.mubr.f32.mxu0 %v1128
      %1294 = vmatmul.mubr.f32.gmra.mxu0 %v1063
      %v1295 = vpop.f32.mrf.mxu0
      %v1296 = vadd.f32 0.0, %v1295
      %v1297 = vpop.f32.mrf.mxu0
      %v1298 = vadd.f32 0.0, %v1297
      %1299 = vmatprep.mubr.f32.mxu0 %v1131
      %1300 = vmatmul.mubr.f32.gmra.mxu0 %v1065
      %v1301 = vpop.f32.mrf.mxu0
      %v1302 = vadd.f32 0.0, %v1301
      %v1303 = vpop.f32.mrf.mxu0
      %v1304 = vadd.f32 0.0, %v1303
      %1305 = vmatprep.mubr.f32.mxu0 %v1134
      %1306 = vmatmul.mubr.f32.gmra.mxu0 %v1067
      %v1307 = vpop.f32.mrf.mxu0
      %v1308 = vadd.f32 0.0, %v1307
      %v1309 = vpop.f32.mrf.mxu0
      %v1310 = vadd.f32 0.0, %v1309
      %1311 = vmatprep.mubr.f32.mxu0 %v1137
      %1312 = vmatmul.mubr.f32.gmra.mxu0 %v1069
      %v1313 = vpop.f32.mrf.mxu0
      %v1314 = vadd.f32 0.0, %v1313
      %v1315 = vpop.f32.mrf.mxu0
      %v1316 = vadd.f32 0.0, %v1315
      %1317 = vmatprep.mubr.f32.mxu0 %v1140
      %1318 = vmatmul.mubr.f32.gmra.mxu0 %v1071
      %v1319 = vpop.f32.mrf.mxu0
      %v1320 = vadd.f32 0.0, %v1319
      %v1321 = vpop.f32.mrf.mxu0
      %v1322 = vadd.f32 0.0, %v1321
      %1323 = vmatprep.mubr.f32.mxu0 %v1143
      %1324 = vmatmul.mubr.f32.gmra.mxu0 %v1073
      %v1325 = vpop.f32.mrf.mxu0
      %v1326 = vadd.f32 0.0, %v1325
      %v1327 = vpop.f32.mrf.mxu0
      %v1328 = vadd.f32 0.0, %v1327
      %1329 = vmatprep.mubr.f32.mxu0 %v1146
      %1330 = vmatmul.mubr.f32.gmra.mxu0 %v1075
      %v1331 = vpop.f32.mrf.mxu0
      %v1332 = vadd.f32 0.0, %v1331
      %v1333 = vpop.f32.mrf.mxu0
      %v1334 = vadd.f32 0.0, %v1333
      %1335 = vmatprep.mubr.f32.mxu0 %v1149
      %1336 = vmatmul.mubr.f32.gmra.mxu0 %v1077
      %v1337 = vpop.f32.mrf.mxu0
      %v1338 = vadd.f32 0.0, %v1337
      %v1339 = vpop.f32.mrf.mxu0
      %v1340 = vadd.f32 0.0, %v1339
      %1341 = vmatprep.mubr.f32.mxu0 %v1152
      %1342 = vmatmul.mubr.f32.gmra.mxu0 %v1079
      %v1343 = vpop.f32.mrf.mxu0
      %v1344 = vadd.f32 0.0, %v1343
      %v1345 = vpop.f32.mrf.mxu0
      %v1346 = vadd.f32 0.0, %v1345
      %1347 = vmatprep.mubr.f32.mxu0 %v1155
      %1348 = vmatmul.mubr.f32.gmra.mxu0 %v1081
      %v1349 = vpop.f32.mrf.mxu0
      %v1350 = vadd.f32 0.0, %v1349
      %v1351 = vpop.f32.mrf.mxu0
      %v1352 = vadd.f32 0.0, %v1351
      %1353 = vmatprep.mubr.f32.mxu0 %v1158
      %1354 = vmatmul.mubr.f32.gmra.mxu0 %v1083
      %v1355 = vpop.f32.mrf.mxu0
      %v1356 = vadd.f32 0.0, %v1355
      %v1357 = vpop.f32.mrf.mxu0
      %v1358 = vadd.f32 0.0, %v1357
      %1359 = vmatprep.mubr.f32.mxu0 %v1161
      %1360 = vmatmul.mubr.f32.gmra.mxu0 %v1085
      %v1361 = vpop.f32.mrf.mxu0
      %v1362 = vadd.f32 0.0, %v1361
      %v1363 = vpop.f32.mrf.mxu0
      %v1364 = vadd.f32 0.0, %v1363
      %1365 = vmatprep.mubr.f32.mxu0 %v1164
      %1366 = vmatmul.mubr.f32.gmra.mxu0 %v1087
      %v1367 = vpop.f32.mrf.mxu0
      %v1368 = vadd.f32 0.0, %v1367
      %v1369 = vpop.f32.mrf.mxu0
      %v1370 = vadd.f32 0.0, %v1369
      %1371 = vmatprep.mubr.f32.mxu0 %v1167
      %1372 = vmatmul.mubr.f32.gmra.mxu0 %v1089
      %v1373 = vpop.f32.mrf.mxu0
      %v1374 = vadd.f32 0.0, %v1373
      %v1375 = vpop.f32.mrf.mxu0
      %v1376 = vadd.f32 0.0, %v1375
      %1377 = vmatprep.mubr.f32.mxu0 %v1170
      %1378 = vmatmul.mubr.f32.gmra.mxu0 %v1091
      %v1379 = vpop.f32.mrf.mxu0
      %v1380 = vadd.f32 0.0, %v1379
      %v1381 = vpop.f32.mrf.mxu0
      %v1382 = vadd.f32 0.0, %v1381
      %1383 = vmatprep.mubr.f32.mxu0 %v1173
      %1384 = vmatmul.mubr.f32.gmra.mxu0 %v1093
      %v1385 = vpop.f32.mrf.mxu0
      %v1386 = vadd.f32 0.0, %v1385
      %v1387 = vpop.f32.mrf.mxu0
      %v1388 = vadd.f32 0.0, %v1387
      %1389 = vmatprep.mubr.f32.mxu0 %v1176
      %1390 = vmatmul.mubr.f32.gmra.mxu0 %v1095
      %v1391 = vpop.f32.mrf.mxu0
      %v1392 = vadd.f32 0.0, %v1391
      %v1393 = vpop.f32.mrf.mxu0
      %v1394 = vadd.f32 0.0, %v1393
      %1395 = vmatprep.mubr.f32.mxu0 %v1179
      %1396 = vmatmul.mubr.f32.gmra.mxu0 %v1097
      %v1397 = vpop.f32.mrf.mxu0
      %v1398 = vadd.f32 0.0, %v1397
      %v1399 = vpop.f32.mrf.mxu0
      %v1400 = vadd.f32 0.0, %v1399
      %1401 = vmatprep.mubr.f32.mxu0 %v1182
      %1402 = vmatmul.mubr.f32.gmra.mxu0 %v1099
      %v1403 = vpop.f32.mrf.mxu0
      %v1404 = vadd.f32 0.0, %v1403
      %v1405 = vpop.f32.mrf.mxu0
      %v1406 = vadd.f32 0.0, %v1405
      %1407 = vmatprep.mubr.f32.mxu0 %v1185
      %1408 = vmatmul.mubr.f32.gmra.mxu0 %v1101
      %v1409 = vpop.f32.mrf.mxu0
      %v1410 = vadd.f32 0.0, %v1409
      %v1411 = vpop.f32.mrf.mxu0
      %v1412 = vadd.f32 0.0, %v1411
      %1413 = vmatprep.mubr.f32.mxu0 %v1188
      %1414 = vmatmul.mubr.f32.gmra.mxu0 %v1103
      %v1415 = vpop.f32.mrf.mxu0
      %v1416 = vadd.f32 0.0, %v1415
      %v1417 = vpop.f32.mrf.mxu0
      %v1418 = vadd.f32 0.0, %v1417
      %1419 = vmatprep.mubr.f32.mxu0 %v1191
      %1420 = vmatmul.mubr.f32.gmra.mxu0 %v1105
      %v1421 = vpop.f32.mrf.mxu0
      %v1422 = vadd.f32 0.0, %v1421
      %v1423 = vpop.f32.mrf.mxu0
      %v1424 = vadd.f32 0.0, %v1423
      %1425 = vmatprep.mubr.f32.mxu0 %v1194
      %1426 = vmatmul.mubr.f32.gmra.mxu0 %v1107
      %v1427 = vpop.f32.mrf.mxu0
      %v1428 = vadd.f32 0.0, %v1427
      %v1429 = vpop.f32.mrf.mxu0
      %v1430 = vadd.f32 0.0, %v1429
      %1431 = vmatprep.mubr.f32.mxu0 %v1197
      %1432 = vmatmul.mubr.f32.gmra.mxu0 %v1109
      %v1433 = vpop.f32.mrf.mxu0
      %v1434 = vadd.f32 0.0, %v1433
      %v1435 = vpop.f32.mrf.mxu0
      %v1436 = vadd.f32 0.0, %v1435
      %1437 = vdwg.mxu0
      %1438 = vmatprep.subr.mxu0 %v958
      %1439 = vmatpush1.msra.mxu0 %v957
      %1440 = vmatprep.subr.mxu0 %v951
      %1441 = vmatpush1.msra.mxu0 %v950
      %1442 = vmatprep.subr.mxu0 %v944
      %1443 = vmatpush1.msra.mxu0 %v943
      %1444 = vmatprep.subr.mxu0 %v937
      %1445 = vmatpush1.msra.mxu0 %v936
      %1446 = vmatprep.subr.mxu0 %v930
      %1447 = vmatpush1.msra.mxu0 %v929
      %1448 = vmatprep.subr.mxu0 %v923
      %1449 = vmatpush1.msra.mxu0 %v922
      %1450 = vmatprep.subr.mxu0 %v916
      %1451 = vmatpush1.msra.mxu0 %v915
      %1452 = vmatprep.subr.mxu0 %v909
      %1453 = vmatpush1.msra.mxu0 %v908
      %1454 = vmatprep.subr.mxu0 %v902
      %1455 = vmatpush1.msra.mxu0 %v901
      %1456 = vmatprep.subr.mxu0 %v895
      %1457 = vmatpush1.msra.mxu0 %v894
      %1458 = vmatprep.subr.mxu0 %v888
      %1459 = vmatpush1.msra.mxu0 %v887
      %1460 = vmatprep.subr.mxu0 %v881
      %1461 = vmatpush1.msra.mxu0 %v880
      %1462 = vmatprep.subr.mxu0 %v874
      %1463 = vmatpush1.msra.mxu0 %v873
      %1464 = vmatprep.subr.mxu0 %v867
      %1465 = vmatpush1.msra.mxu0 %v866
      %1466 = vmatprep.subr.mxu0 %v860
      %1467 = vmatpush1.msra.mxu0 %v859
      %1468 = vmatprep.subr.mxu0 %v853
      %1469 = vmatpush1.msra.mxu0 %v852
      %1470 = vmatprep.subr.mxu0 0.0
      %1471 = vmatpush2.msra.mxu0 0.0
      %1472 = vmatprep.subr.mxu0 0.0
      %1473 = vmatpush2.msra.mxu0 0.0
      %1474 = vmatprep.subr.mxu0 0.0
      %1475 = vmatpush2.msra.mxu0 0.0
      %1476 = vmatprep.subr.mxu0 %v1049
      %1477 = vmatpush2.msra.mxu0 %v1048
      %1478 = vmatprep.subr.mxu0 %v1042
      %1479 = vmatpush2.msra.mxu0 %v1041
      %1480 = vmatprep.subr.mxu0 %v1035
      %1481 = vmatpush2.msra.mxu0 %v1034
      %1482 = vmatprep.subr.mxu0 %v1028
      %1483 = vmatpush2.msra.mxu0 %v1027
      %1484 = vmatprep.subr.mxu0 %v1021
      %1485 = vmatpush2.msra.mxu0 %v1020
      %1486 = vmatprep.subr.mxu0 %v1014
      %1487 = vmatpush2.msra.mxu0 %v1013
      %1488 = vmatprep.subr.mxu0 %v1007
      %1489 = vmatpush2.msra.mxu0 %v1006
      %1490 = vmatprep.subr.mxu0 %v1000
      %1491 = vmatpush2.msra.mxu0 %v999
      %1492 = vmatprep.subr.mxu0 %v993
      %1493 = vmatpush2.msra.mxu0 %v992
      %1494 = vmatprep.subr.mxu0 %v986
      %1495 = vmatpush2.msra.mxu0 %v985
      %1496 = vmatprep.subr.mxu0 %v979
      %1497 = vmatpush2.msra.mxu0 %v978
      %1498 = vmatprep.subr.mxu0 %v972
      %1499 = vmatpush2.msra.mxu0 %v971
      %1500 = vmatprep.subr.mxu0 %v965
      %1501 = vmatpush2.msra.mxu0 %v964
      %1502 = vmatprep.mubr.f32.mxu0 %v1113
      %1503 = vmatmul.mubr.f32.gmra.mxu0 %v1053
      %v1504 = vpop.f32.mrf.mxu0
      %v1505 = vadd.f32 0.0, %v1504
      %v1506 = vpop.f32.mrf.mxu0
      %v1507 = vadd.f32 0.0, %v1506
      %1508 = vmatprep.mubr.f32.mxu0 %v1116
      %1509 = vmatmul.mubr.f32.gmra.mxu0 %v1055
      %v1510 = vpop.f32.mrf.mxu0
      %v1511 = vadd.f32 0.0, %v1510
      %v1512 = vpop.f32.mrf.mxu0
      %v1513 = vadd.f32 0.0, %v1512
      %1514 = vmatprep.mubr.f32.mxu0 %v1119
      %1515 = vmatmul.mubr.f32.gmra.mxu0 %v1057
      %v1516 = vpop.f32.mrf.mxu0
      %v1517 = vadd.f32 0.0, %v1516
      %v1518 = vpop.f32.mrf.mxu0
      %v1519 = vadd.f32 0.0, %v1518
      %1520 = vmatprep.mubr.f32.mxu0 %v1122
      %1521 = vmatmul.mubr.f32.gmra.mxu0 %v1059
      %v1522 = vpop.f32.mrf.mxu0
      %v1523 = vadd.f32 0.0, %v1522
      %v1524 = vpop.f32.mrf.mxu0
      %v1525 = vadd.f32 0.0, %v1524
      %1526 = vmatprep.mubr.f32.mxu0 %v1125
      %1527 = vmatmul.mubr.f32.gmra.mxu0 %v1061
      %v1528 = vpop.f32.mrf.mxu0
      %v1529 = vadd.f32 0.0, %v1528
      %v1530 = vpop.f32.mrf.mxu0
      %v1531 = vadd.f32 0.0, %v1530
      %1532 = vmatprep.mubr.f32.mxu0 %v1128
      %1533 = vmatmul.mubr.f32.gmra.mxu0 %v1063
      %v1534 = vpop.f32.mrf.mxu0
      %v1535 = vadd.f32 0.0, %v1534
      %v1536 = vpop.f32.mrf.mxu0
      %v1537 = vadd.f32 0.0, %v1536
      %1538 = vmatprep.mubr.f32.mxu0 %v1131
      %1539 = vmatmul.mubr.f32.gmra.mxu0 %v1065
      %v1540 = vpop.f32.mrf.mxu0
      %v1541 = vadd.f32 0.0, %v1540
      %v1542 = vpop.f32.mrf.mxu0
      %v1543 = vadd.f32 0.0, %v1542
      %1544 = vmatprep.mubr.f32.mxu0 %v1134
      %1545 = vmatmul.mubr.f32.gmra.mxu0 %v1067
      %v1546 = vpop.f32.mrf.mxu0
      %v1547 = vadd.f32 0.0, %v1546
      %v1548 = vpop.f32.mrf.mxu0
      %v1549 = vadd.f32 0.0, %v1548
      %1550 = vmatprep.mubr.f32.mxu0 %v1137
      %1551 = vmatmul.mubr.f32.gmra.mxu0 %v1069
      %v1552 = vpop.f32.mrf.mxu0
      %v1553 = vadd.f32 0.0, %v1552
      %v1554 = vpop.f32.mrf.mxu0
      %v1555 = vadd.f32 0.0, %v1554
      %1556 = vmatprep.mubr.f32.mxu0 %v1140
      %1557 = vmatmul.mubr.f32.gmra.mxu0 %v1071
      %v1558 = vpop.f32.mrf.mxu0
      %v1559 = vadd.f32 0.0, %v1558
      %v1560 = vpop.f32.mrf.mxu0
      %v1561 = vadd.f32 0.0, %v1560
      %1562 = vmatprep.mubr.f32.mxu0 %v1143
      %1563 = vmatmul.mubr.f32.gmra.mxu0 %v1073
      %v1564 = vpop.f32.mrf.mxu0
      %v1565 = vadd.f32 0.0, %v1564
      %v1566 = vpop.f32.mrf.mxu0
      %v1567 = vadd.f32 0.0, %v1566
      %1568 = vmatprep.mubr.f32.mxu0 %v1146
      %1569 = vmatmul.mubr.f32.gmra.mxu0 %v1075
      %v1570 = vpop.f32.mrf.mxu0
      %v1571 = vadd.f32 0.0, %v1570
      %v1572 = vpop.f32.mrf.mxu0
      %v1573 = vadd.f32 0.0, %v1572
      %1574 = vmatprep.mubr.f32.mxu0 %v1149
      %1575 = vmatmul.mubr.f32.gmra.mxu0 %v1077
      %v1576 = vpop.f32.mrf.mxu0
      %v1577 = vadd.f32 0.0, %v1576
      %v1578 = vpop.f32.mrf.mxu0
      %v1579 = vadd.f32 0.0, %v1578
      %1580 = vmatprep.mubr.f32.mxu0 %v1152
      %1581 = vmatmul.mubr.f32.gmra.mxu0 %v1079
      %v1582 = vpop.f32.mrf.mxu0
      %v1583 = vadd.f32 0.0, %v1582
      %v1584 = vpop.f32.mrf.mxu0
      %v1585 = vadd.f32 0.0, %v1584
      %1586 = vmatprep.mubr.f32.mxu0 %v1155
      %1587 = vmatmul.mubr.f32.gmra.mxu0 %v1081
      %v1588 = vpop.f32.mrf.mxu0
      %v1589 = vadd.f32 0.0, %v1588
      %v1590 = vpop.f32.mrf.mxu0
      %v1591 = vadd.f32 0.0, %v1590
      %1592 = vmatprep.mubr.f32.mxu0 %v1158
      %1593 = vmatmul.mubr.f32.gmra.mxu0 %v1083
      %v1594 = vpop.f32.mrf.mxu0
      %v1595 = vadd.f32 0.0, %v1594
      %v1596 = vpop.f32.mrf.mxu0
      %v1597 = vadd.f32 0.0, %v1596
      %1598 = vmatprep.mubr.f32.mxu0 %v1161
      %1599 = vmatmul.mubr.f32.gmra.mxu0 %v1085
      %v1600 = vpop.f32.mrf.mxu0
      %v1601 = vadd.f32 0.0, %v1600
      %v1602 = vpop.f32.mrf.mxu0
      %v1603 = vadd.f32 0.0, %v1602
      %1604 = vmatprep.mubr.f32.mxu0 %v1164
      %1605 = vmatmul.mubr.f32.gmra.mxu0 %v1087
      %v1606 = vpop.f32.mrf.mxu0
      %v1607 = vadd.f32 0.0, %v1606
      %v1608 = vpop.f32.mrf.mxu0
      %v1609 = vadd.f32 0.0, %v1608
      %1610 = vmatprep.mubr.f32.mxu0 %v1167
      %1611 = vmatmul.mubr.f32.gmra.mxu0 %v1089
      %v1612 = vpop.f32.mrf.mxu0
      %v1613 = vadd.f32 0.0, %v1612
      %v1614 = vpop.f32.mrf.mxu0
      %v1615 = vadd.f32 0.0, %v1614
      %1616 = vmatprep.mubr.f32.mxu0 %v1170
      %1617 = vmatmul.mubr.f32.gmra.mxu0 %v1091
      %v1618 = vpop.f32.mrf.mxu0
      %v1619 = vadd.f32 0.0, %v1618
      %v1620 = vpop.f32.mrf.mxu0
      %v1621 = vadd.f32 0.0, %v1620
      %1622 = vmatprep.mubr.f32.mxu0 %v1173
      %1623 = vmatmul.mubr.f32.gmra.mxu0 %v1093
      %v1624 = vpop.f32.mrf.mxu0
      %v1625 = vadd.f32 0.0, %v1624
      %v1626 = vpop.f32.mrf.mxu0
      %v1627 = vadd.f32 0.0, %v1626
      %1628 = vmatprep.mubr.f32.mxu0 %v1176
      %1629 = vmatmul.mubr.f32.gmra.mxu0 %v1095
      %v1630 = vpop.f32.mrf.mxu0
      %v1631 = vadd.f32 0.0, %v1630
      %v1632 = vpop.f32.mrf.mxu0
      %v1633 = vadd.f32 0.0, %v1632
      %1634 = vmatprep.mubr.f32.mxu0 %v1179
      %1635 = vmatmul.mubr.f32.gmra.mxu0 %v1097
      %v1636 = vpop.f32.mrf.mxu0
      %v1637 = vadd.f32 0.0, %v1636
      %v1638 = vpop.f32.mrf.mxu0
      %v1639 = vadd.f32 0.0, %v1638
      %1640 = vmatprep.mubr.f32.mxu0 %v1182
      %1641 = vmatmul.mubr.f32.gmra.mxu0 %v1099
      %v1642 = vpop.f32.mrf.mxu0
      %v1643 = vadd.f32 0.0, %v1642
      %v1644 = vpop.f32.mrf.mxu0
      %v1645 = vadd.f32 0.0, %v1644
      %1646 = vmatprep.mubr.f32.mxu0 %v1185
      %1647 = vmatmul.mubr.f32.gmra.mxu0 %v1101
      %v1648 = vpop.f32.mrf.mxu0
      %v1649 = vadd.f32 0.0, %v1648
      %v1650 = vpop.f32.mrf.mxu0
      %v1651 = vadd.f32 0.0, %v1650
      %1652 = vmatprep.mubr.f32.mxu0 %v1188
      %1653 = vmatmul.mubr.f32.gmra.mxu0 %v1103
      %v1654 = vpop.f32.mrf.mxu0
      %v1655 = vadd.f32 0.0, %v1654
      %v1656 = vpop.f32.mrf.mxu0
      %v1657 = vadd.f32 0.0, %v1656
      %1658 = vmatprep.mubr.f32.mxu0 %v1191
      %1659 = vmatmul.mubr.f32.gmra.mxu0 %v1105
      %v1660 = vpop.f32.mrf.mxu0
      %v1661 = vadd.f32 0.0, %v1660
      %v1662 = vpop.f32.mrf.mxu0
      %v1663 = vadd.f32 0.0, %v1662
      %1664 = vmatprep.mubr.f32.mxu0 %v1194
      %1665 = vmatmul.mubr.f32.gmra.mxu0 %v1107
      %v1666 = vpop.f32.mrf.mxu0
      %v1667 = vadd.f32 0.0, %v1666
      %v1668 = vpop.f32.mrf.mxu0
      %v1669 = vadd.f32 0.0, %v1668
      %1670 = vmatprep.mubr.f32.mxu0 %v1197
      %1671 = vmatmul.mubr.f32.gmra.mxu0 %v1109
      %v1672 = vpop.f32.mrf.mxu0
      %v1673 = vadd.f32 0.0, %v1672
      %v1674 = vpop.f32.mrf.mxu0
      %v1675 = vadd.f32 0.0, %v1674
      %1676 = vdwg.mxu0
      %1677 = vmatprep.subr.mxu0 %v960
      %1678 = vmatpush1.msra.mxu0 %v959
      %1679 = vmatprep.subr.mxu0 %v953
      %1680 = vmatpush1.msra.mxu0 %v952
      %1681 = vmatprep.subr.mxu0 %v946
      %1682 = vmatpush1.msra.mxu0 %v945
      %1683 = vmatprep.subr.mxu0 %v939
      %1684 = vmatpush1.msra.mxu0 %v938
      %1685 = vmatprep.subr.mxu0 %v932
      %1686 = vmatpush1.msra.mxu0 %v931
      %1687 = vmatprep.subr.mxu0 %v925
      %1688 = vmatpush1.msra.mxu0 %v924
      %1689 = vmatprep.subr.mxu0 %v918
      %1690 = vmatpush1.msra.mxu0 %v917
      %1691 = vmatprep.subr.mxu0 %v911
      %1692 = vmatpush1.msra.mxu0 %v910
      %1693 = vmatprep.subr.mxu0 %v904
      %1694 = vmatpush1.msra.mxu0 %v903
      %1695 = vmatprep.subr.mxu0 %v897
      %1696 = vmatpush1.msra.mxu0 %v896
      %1697 = vmatprep.subr.mxu0 %v890
      %1698 = vmatpush1.msra.mxu0 %v889
      %1699 = vmatprep.subr.mxu0 %v883
      %1700 = vmatpush1.msra.mxu0 %v882
      %1701 = vmatprep.subr.mxu0 %v876
      %1702 = vmatpush1.msra.mxu0 %v875
      %1703 = vmatprep.subr.mxu0 %v869
      %1704 = vmatpush1.msra.mxu0 %v868
      %1705 = vmatprep.subr.mxu0 %v862
      %1706 = vmatpush1.msra.mxu0 %v861
      %1707 = vmatprep.subr.mxu0 %v855
      %1708 = vmatpush1.msra.mxu0 %v854
      %1709 = vmatprep.subr.mxu0 0.0
      %1710 = vmatpush2.msra.mxu0 0.0
      %1711 = vmatprep.subr.mxu0 0.0
      %1712 = vmatpush2.msra.mxu0 0.0
      %1713 = vmatprep.subr.mxu0 0.0
      %1714 = vmatpush2.msra.mxu0 0.0
      %1715 = vmatprep.subr.mxu0 %v1051
      %1716 = vmatpush2.msra.mxu0 %v1050
      %1717 = vmatprep.subr.mxu0 %v1044
      %1718 = vmatpush2.msra.mxu0 %v1043
      %1719 = vmatprep.subr.mxu0 %v1037
      %1720 = vmatpush2.msra.mxu0 %v1036
      %1721 = vmatprep.subr.mxu0 %v1030
      %1722 = vmatpush2.msra.mxu0 %v1029
      %1723 = vmatprep.subr.mxu0 %v1023
      %1724 = vmatpush2.msra.mxu0 %v1022
      %1725 = vmatprep.subr.mxu0 %v1016
      %1726 = vmatpush2.msra.mxu0 %v1015
      %1727 = vmatprep.subr.mxu0 %v1009
      %1728 = vmatpush2.msra.mxu0 %v1008
      %1729 = vmatprep.subr.mxu0 %v1002
      %1730 = vmatpush2.msra.mxu0 %v1001
      %1731 = vmatprep.subr.mxu0 %v995
      %1732 = vmatpush2.msra.mxu0 %v994
      %1733 = vmatprep.subr.mxu0 %v988
      %1734 = vmatpush2.msra.mxu0 %v987
      %1735 = vmatprep.subr.mxu0 %v981
      %1736 = vmatpush2.msra.mxu0 %v980
      %1737 = vmatprep.subr.mxu0 %v974
      %1738 = vmatpush2.msra.mxu0 %v973
      %1739 = vmatprep.subr.mxu0 %v967
      %1740 = vmatpush2.msra.mxu0 %v966
      %1741 = vmatprep.mubr.f32.mxu0 %v1113
      %1742 = vmatmul.mubr.f32.gmra.mxu0 %v1053
      %v1743 = vpop.f32.mrf.mxu0
      %v1744 = vadd.f32 0.0, %v1743
      %v1745 = vpop.f32.mrf.mxu0
      %v1746 = vadd.f32 0.0, %v1745
      %1747 = vmatprep.mubr.f32.mxu0 %v1116
      %1748 = vmatmul.mubr.f32.gmra.mxu0 %v1055
      %v1749 = vpop.f32.mrf.mxu0
      %v1750 = vadd.f32 0.0, %v1749
      %v1751 = vpop.f32.mrf.mxu0
      %v1752 = vadd.f32 0.0, %v1751
      %1753 = vmatprep.mubr.f32.mxu0 %v1119
      %1754 = vmatmul.mubr.f32.gmra.mxu0 %v1057
      %v1755 = vpop.f32.mrf.mxu0
      %v1756 = vadd.f32 0.0, %v1755
      %v1757 = vpop.f32.mrf.mxu0
      %v1758 = vadd.f32 0.0, %v1757
      %1759 = vmatprep.mubr.f32.mxu0 %v1122
      %1760 = vmatmul.mubr.f32.gmra.mxu0 %v1059
      %v1761 = vpop.f32.mrf.mxu0
      %v1762 = vadd.f32 0.0, %v1761
      %v1763 = vpop.f32.mrf.mxu0
      %v1764 = vadd.f32 0.0, %v1763
      %1765 = vmatprep.mubr.f32.mxu0 %v1125
      %1766 = vmatmul.mubr.f32.gmra.mxu0 %v1061
      %v1767 = vpop.f32.mrf.mxu0
      %v1768 = vadd.f32 0.0, %v1767
      %v1769 = vpop.f32.mrf.mxu0
      %v1770 = vadd.f32 0.0, %v1769
      %1771 = vmatprep.mubr.f32.mxu0 %v1128
      %1772 = vmatmul.mubr.f32.gmra.mxu0 %v1063
      %v1773 = vpop.f32.mrf.mxu0
      %v1774 = vadd.f32 0.0, %v1773
      %v1775 = vpop.f32.mrf.mxu0
      %v1776 = vadd.f32 0.0, %v1775
      %1777 = vmatprep.mubr.f32.mxu0 %v1131
      %1778 = vmatmul.mubr.f32.gmra.mxu0 %v1065
      %v1779 = vpop.f32.mrf.mxu0
      %v1780 = vadd.f32 0.0, %v1779
      %v1781 = vpop.f32.mrf.mxu0
      %v1782 = vadd.f32 0.0, %v1781
      %1783 = vmatprep.mubr.f32.mxu0 %v1134
      %1784 = vmatmul.mubr.f32.gmra.mxu0 %v1067
      %v1785 = vpop.f32.mrf.mxu0
      %v1786 = vadd.f32 0.0, %v1785
      %v1787 = vpop.f32.mrf.mxu0
      %v1788 = vadd.f32 0.0, %v1787
      %1789 = vmatprep.mubr.f32.mxu0 %v1137
      %1790 = vmatmul.mubr.f32.gmra.mxu0 %v1069
      %v1791 = vpop.f32.mrf.mxu0
      %v1792 = vadd.f32 0.0, %v1791
      %v1793 = vpop.f32.mrf.mxu0
      %v1794 = vadd.f32 0.0, %v1793
      %1795 = vmatprep.mubr.f32.mxu0 %v1140
      %1796 = vmatmul.mubr.f32.gmra.mxu0 %v1071
      %v1797 = vpop.f32.mrf.mxu0
      %v1798 = vadd.f32 0.0, %v1797
      %v1799 = vpop.f32.mrf.mxu0
      %v1800 = vadd.f32 0.0, %v1799
      %1801 = vmatprep.mubr.f32.mxu0 %v1143
      %1802 = vmatmul.mubr.f32.gmra.mxu0 %v1073
      %v1803 = vpop.f32.mrf.mxu0
      %v1804 = vadd.f32 0.0, %v1803
      %v1805 = vpop.f32.mrf.mxu0
      %v1806 = vadd.f32 0.0, %v1805
      %1807 = vmatprep.mubr.f32.mxu0 %v1146
      %1808 = vmatmul.mubr.f32.gmra.mxu0 %v1075
      %v1809 = vpop.f32.mrf.mxu0
      %v1810 = vadd.f32 0.0, %v1809
      %v1811 = vpop.f32.mrf.mxu0
      %v1812 = vadd.f32 0.0, %v1811
      %1813 = vmatprep.mubr.f32.mxu0 %v1149
      %1814 = vmatmul.mubr.f32.gmra.mxu0 %v1077
      %v1815 = vpop.f32.mrf.mxu0
      %v1816 = vadd.f32 0.0, %v1815
      %v1817 = vpop.f32.mrf.mxu0
      %v1818 = vadd.f32 0.0, %v1817
      %1819 = vmatprep.mubr.f32.mxu0 %v1152
      %1820 = vmatmul.mubr.f32.gmra.mxu0 %v1079
      %v1821 = vpop.f32.mrf.mxu0
      %v1822 = vadd.f32 0.0, %v1821
      %v1823 = vpop.f32.mrf.mxu0
      %v1824 = vadd.f32 0.0, %v1823
      %1825 = vmatprep.mubr.f32.mxu0 %v1155
      %1826 = vmatmul.mubr.f32.gmra.mxu0 %v1081
      %v1827 = vpop.f32.mrf.mxu0
      %v1828 = vadd.f32 0.0, %v1827
      %v1829 = vpop.f32.mrf.mxu0
      %v1830 = vadd.f32 0.0, %v1829
      %1831 = vmatprep.mubr.f32.mxu0 %v1158
      %1832 = vmatmul.mubr.f32.gmra.mxu0 %v1083
      %v1833 = vpop.f32.mrf.mxu0
      %v1834 = vadd.f32 0.0, %v1833
      %v1835 = vpop.f32.mrf.mxu0
      %v1836 = vadd.f32 0.0, %v1835
      %1837 = vmatprep.mubr.f32.mxu0 %v1161
      %1838 = vmatmul.mubr.f32.gmra.mxu0 %v1085
      %v1839 = vpop.f32.mrf.mxu0
      %v1840 = vadd.f32 0.0, %v1839
      %v1841 = vpop.f32.mrf.mxu0
      %v1842 = vadd.f32 0.0, %v1841
      %1843 = vmatprep.mubr.f32.mxu0 %v1164
      %1844 = vmatmul.mubr.f32.gmra.mxu0 %v1087
      %v1845 = vpop.f32.mrf.mxu0
      %v1846 = vadd.f32 0.0, %v1845
      %v1847 = vpop.f32.mrf.mxu0
      %v1848 = vadd.f32 0.0, %v1847
      %1849 = vmatprep.mubr.f32.mxu0 %v1167
      %1850 = vmatmul.mubr.f32.gmra.mxu0 %v1089
      %v1851 = vpop.f32.mrf.mxu0
      %v1852 = vadd.f32 0.0, %v1851
      %v1853 = vpop.f32.mrf.mxu0
      %v1854 = vadd.f32 0.0, %v1853
      %1855 = vmatprep.mubr.f32.mxu0 %v1170
      %1856 = vmatmul.mubr.f32.gmra.mxu0 %v1091
      %v1857 = vpop.f32.mrf.mxu0
      %v1858 = vadd.f32 0.0, %v1857
      %v1859 = vpop.f32.mrf.mxu0
      %v1860 = vadd.f32 0.0, %v1859
      %1861 = vmatprep.mubr.f32.mxu0 %v1173
      %1862 = vmatmul.mubr.f32.gmra.mxu0 %v1093
      %v1863 = vpop.f32.mrf.mxu0
      %v1864 = vadd.f32 0.0, %v1863
      %v1865 = vpop.f32.mrf.mxu0
      %v1866 = vadd.f32 0.0, %v1865
      %1867 = vmatprep.mubr.f32.mxu0 %v1176
      %1868 = vmatmul.mubr.f32.gmra.mxu0 %v1095
      %v1869 = vpop.f32.mrf.mxu0
      %v1870 = vadd.f32 0.0, %v1869
      %v1871 = vpop.f32.mrf.mxu0
      %v1872 = vadd.f32 0.0, %v1871
      %1873 = vmatprep.mubr.f32.mxu0 %v1179
      %1874 = vmatmul.mubr.f32.gmra.mxu0 %v1097
      %v1875 = vpop.f32.mrf.mxu0
      %v1876 = vadd.f32 0.0, %v1875
      %v1877 = vpop.f32.mrf.mxu0
      %v1878 = vadd.f32 0.0, %v1877
      %1879 = vmatprep.mubr.f32.mxu0 %v1182
      %1880 = vmatmul.mubr.f32.gmra.mxu0 %v1099
      %v1881 = vpop.f32.mrf.mxu0
      %v1882 = vadd.f32 0.0, %v1881
      %v1883 = vpop.f32.mrf.mxu0
      %v1884 = vadd.f32 0.0, %v1883
      %1885 = vmatprep.mubr.f32.mxu0 %v1185
      %1886 = vmatmul.mubr.f32.gmra.mxu0 %v1101
      %v1887 = vpop.f32.mrf.mxu0
      %v1888 = vadd.f32 0.0, %v1887
      %v1889 = vpop.f32.mrf.mxu0
      %v1890 = vadd.f32 0.0, %v1889
      %1891 = vmatprep.mubr.f32.mxu0 %v1188
      %1892 = vmatmul.mubr.f32.gmra.mxu0 %v1103
      %v1893 = vpop.f32.mrf.mxu0
      %v1894 = vadd.f32 0.0, %v1893
      %v1895 = vpop.f32.mrf.mxu0
      %v1896 = vadd.f32 0.0, %v1895
      %1897 = vmatprep.mubr.f32.mxu0 %v1191
      %1898 = vmatmul.mubr.f32.gmra.mxu0 %v1105
      %v1899 = vpop.f32.mrf.mxu0
      %v1900 = vadd.f32 0.0, %v1899
      %v1901 = vpop.f32.mrf.mxu0
      %v1902 = vadd.f32 0.0, %v1901
      %1903 = vmatprep.mubr.f32.mxu0 %v1194
      %1904 = vmatmul.mubr.f32.gmra.mxu0 %v1107
      %v1905 = vpop.f32.mrf.mxu0
      %v1906 = vadd.f32 0.0, %v1905
      %v1907 = vpop.f32.mrf.mxu0
      %v1908 = vadd.f32 0.0, %v1907
      %1909 = vmatprep.mubr.f32.mxu0 %v1197
      %1910 = vmatmul.mubr.f32.gmra.mxu0 %v1109
      %v1911 = vpop.f32.mrf.mxu0
      %v1912 = vadd.f32 0.0, %v1911
      %v1913 = vpop.f32.mrf.mxu0
      %v1914 = vadd.f32 0.0, %v1913
      %1915 = vdwg.mxu0
      %1916 = vmatprep.subr.mxu0 0.0
      %1917 = vmatpush1.msra.mxu0 %v961
      %1918 = vmatprep.subr.mxu0 0.0
      %1919 = vmatpush1.msra.mxu0 %v954
      %1920 = vmatprep.subr.mxu0 0.0
      %1921 = vmatpush1.msra.mxu0 %v947
      %1922 = vmatprep.subr.mxu0 0.0
      %1923 = vmatpush1.msra.mxu0 %v940
      %1924 = vmatprep.subr.mxu0 0.0
      %1925 = vmatpush1.msra.mxu0 %v933
      %1926 = vmatprep.subr.mxu0 0.0
      %1927 = vmatpush1.msra.mxu0 %v926
      %1928 = vmatprep.subr.mxu0 0.0
      %1929 = vmatpush1.msra.mxu0 %v919
      %1930 = vmatprep.subr.mxu0 0.0
      %1931 = vmatpush1.msra.mxu0 %v912
      %1932 = vmatprep.subr.mxu0 0.0
      %1933 = vmatpush1.msra.mxu0 %v905
      %1934 = vmatprep.subr.mxu0 0.0
      %1935 = vmatpush1.msra.mxu0 %v898
      %1936 = vmatprep.subr.mxu0 0.0
      %1937 = vmatpush1.msra.mxu0 %v891
      %1938 = vmatprep.subr.mxu0 0.0
      %1939 = vmatpush1.msra.mxu0 %v884
      %1940 = vmatprep.subr.mxu0 0.0
      %1941 = vmatpush1.msra.mxu0 %v877
      %1942 = vmatprep.subr.mxu0 0.0
      %1943 = vmatpush1.msra.mxu0 %v870
      %1944 = vmatprep.subr.mxu0 0.0
      %1945 = vmatpush1.msra.mxu0 %v863
      %1946 = vmatprep.subr.mxu0 0.0
      %1947 = vmatpush1.msra.mxu0 %v856
      %1948 = vmatprep.subr.mxu0 0.0
      %1949 = vmatpush2.msra.mxu0 0.0
      %1950 = vmatprep.subr.mxu0 0.0
      %1951 = vmatpush2.msra.mxu0 0.0
      %1952 = vmatprep.subr.mxu0 0.0
      %1953 = vmatpush2.msra.mxu0 0.0
      %1954 = vmatprep.subr.mxu0 0.0
      %1955 = vmatpush2.msra.mxu0 %v1052
      %1956 = vmatprep.subr.mxu0 0.0
      %1957 = vmatpush2.msra.mxu0 %v1045
      %1958 = vmatprep.subr.mxu0 0.0
      %1959 = vmatpush2.msra.mxu0 %v1038
      %1960 = vmatprep.subr.mxu0 0.0
      %1961 = vmatpush2.msra.mxu0 %v1031
      %1962 = vmatprep.subr.mxu0 0.0
      %1963 = vmatpush2.msra.mxu0 %v1024
      %1964 = vmatprep.subr.mxu0 0.0
      %1965 = vmatpush2.msra.mxu0 %v1017
      %1966 = vmatprep.subr.mxu0 0.0
      %1967 = vmatpush2.msra.mxu0 %v1010
      %1968 = vmatprep.subr.mxu0 0.0
      %1969 = vmatpush2.msra.mxu0 %v1003
      %1970 = vmatprep.subr.mxu0 0.0
      %1971 = vmatpush2.msra.mxu0 %v996
      %1972 = vmatprep.subr.mxu0 0.0
      %1973 = vmatpush2.msra.mxu0 %v989
      %1974 = vmatprep.subr.mxu0 0.0
      %1975 = vmatpush2.msra.mxu0 %v982
      %1976 = vmatprep.subr.mxu0 0.0
      %1977 = vmatpush2.msra.mxu0 %v975
      %1978 = vmatprep.subr.mxu0 0.0
      %1979 = vmatpush2.msra.mxu0 %v968
      %1980 = vmatprep.mubr.f32.mxu0 %v1113
      %1981 = vmatmul.mubr.f32.gmra.mxu0 %v1053
      %v1982 = vpop.f32.mrf.mxu0
      %v1983 = vadd.f32 0.0, %v1982
      %v1984 = vpop.f32.mrf.mxu0
      %1985 = vmatprep.mubr.f32.mxu0 %v1116
      %1986 = vmatmul.mubr.f32.gmra.mxu0 %v1055
      %v1987 = vpop.f32.mrf.mxu0
      %v1988 = vadd.f32 0.0, %v1987
      %v1989 = vpop.f32.mrf.mxu0
      %1990 = vmatprep.mubr.f32.mxu0 %v1119
      %1991 = vmatmul.mubr.f32.gmra.mxu0 %v1057
      %v1992 = vpop.f32.mrf.mxu0
      %v1993 = vadd.f32 0.0, %v1992
      %v1994 = vpop.f32.mrf.mxu0
      %1995 = vmatprep.mubr.f32.mxu0 %v1122
      %1996 = vmatmul.mubr.f32.gmra.mxu0 %v1059
      %v1997 = vpop.f32.mrf.mxu0
      %v1998 = vadd.f32 0.0, %v1997
      %v1999 = vpop.f32.mrf.mxu0
      %2000 = vmatprep.mubr.f32.mxu0 %v1125
      %2001 = vmatmul.mubr.f32.gmra.mxu0 %v1061
      %v2002 = vpop.f32.mrf.mxu0
      %v2003 = vadd.f32 0.0, %v2002
      %v2004 = vpop.f32.mrf.mxu0
      %2005 = vmatprep.mubr.f32.mxu0 %v1128
      %2006 = vmatmul.mubr.f32.gmra.mxu0 %v1063
      %v2007 = vpop.f32.mrf.mxu0
      %v2008 = vadd.f32 0.0, %v2007
      %v2009 = vpop.f32.mrf.mxu0
      %2010 = vmatprep.mubr.f32.mxu0 %v1131
      %2011 = vmatmul.mubr.f32.gmra.mxu0 %v1065
      %v2012 = vpop.f32.mrf.mxu0
      %v2013 = vadd.f32 0.0, %v2012
      %v2014 = vpop.f32.mrf.mxu0
      %2015 = vmatprep.mubr.f32.mxu0 %v1134
      %2016 = vmatmul.mubr.f32.gmra.mxu0 %v1067
      %v2017 = vpop.f32.mrf.mxu0
      %v2018 = vadd.f32 0.0, %v2017
      %v2019 = vpop.f32.mrf.mxu0
      %2020 = vmatprep.mubr.f32.mxu0 %v1137
      %2021 = vmatmul.mubr.f32.gmra.mxu0 %v1069
      %v2022 = vpop.f32.mrf.mxu0
      %v2023 = vadd.f32 0.0, %v2022
      %v2024 = vpop.f32.mrf.mxu0
      %2025 = vmatprep.mubr.f32.mxu0 %v1140
      %2026 = vmatmul.mubr.f32.gmra.mxu0 %v1071
      %v2027 = vpop.f32.mrf.mxu0
      %v2028 = vadd.f32 0.0, %v2027
      %v2029 = vpop.f32.mrf.mxu0
      %2030 = vmatprep.mubr.f32.mxu0 %v1143
      %2031 = vmatmul.mubr.f32.gmra.mxu0 %v1073
      %v2032 = vpop.f32.mrf.mxu0
      %v2033 = vadd.f32 0.0, %v2032
      %v2034 = vpop.f32.mrf.mxu0
      %2035 = vmatprep.mubr.f32.mxu0 %v1146
      %2036 = vmatmul.mubr.f32.gmra.mxu0 %v1075
      %v2037 = vpop.f32.mrf.mxu0
      %v2038 = vadd.f32 0.0, %v2037
      %v2039 = vpop.f32.mrf.mxu0
      %2040 = vmatprep.mubr.f32.mxu0 %v1149
      %2041 = vmatmul.mubr.f32.gmra.mxu0 %v1077
      %v2042 = vpop.f32.mrf.mxu0
      %v2043 = vadd.f32 0.0, %v2042
      %v2044 = vpop.f32.mrf.mxu0
      %2045 = vmatprep.mubr.f32.mxu0 %v1152
      %2046 = vmatmul.mubr.f32.gmra.mxu0 %v1079
      %v2047 = vpop.f32.mrf.mxu0
      %v2048 = vadd.f32 0.0, %v2047
      %v2049 = vpop.f32.mrf.mxu0
      %2050 = vmatprep.mubr.f32.mxu0 %v1155
      %2051 = vmatmul.mubr.f32.gmra.mxu0 %v1081
      %v2052 = vpop.f32.mrf.mxu0
      %v2053 = vadd.f32 0.0, %v2052
      %v2054 = vpop.f32.mrf.mxu0
      %2055 = vmatprep.mubr.f32.mxu0 %v1158
      %2056 = vmatmul.mubr.f32.gmra.mxu0 %v1083
      %v2057 = vpop.f32.mrf.mxu0
      %v2058 = vadd.f32 0.0, %v2057
      %v2059 = vpop.f32.mrf.mxu0
      %2060 = vmatprep.mubr.f32.mxu0 %v1161
      %2061 = vmatmul.mubr.f32.gmra.mxu0 %v1085
      %v2062 = vpop.f32.mrf.mxu0
      %v2063 = vadd.f32 0.0, %v2062
      %v2064 = vpop.f32.mrf.mxu0
      %2065 = vmatprep.mubr.f32.mxu0 %v1164
      %2066 = vmatmul.mubr.f32.gmra.mxu0 %v1087
      %v2067 = vpop.f32.mrf.mxu0
      %v2068 = vadd.f32 0.0, %v2067
      %v2069 = vpop.f32.mrf.mxu0
      %2070 = vmatprep.mubr.f32.mxu0 %v1167
      %2071 = vmatmul.mubr.f32.gmra.mxu0 %v1089
      %v2072 = vpop.f32.mrf.mxu0
      %v2073 = vadd.f32 0.0, %v2072
      %v2074 = vpop.f32.mrf.mxu0
      %2075 = vmatprep.mubr.f32.mxu0 %v1170
      %2076 = vmatmul.mubr.f32.gmra.mxu0 %v1091
      %v2077 = vpop.f32.mrf.mxu0
      %v2078 = vadd.f32 0.0, %v2077
      %v2079 = vpop.f32.mrf.mxu0
      %2080 = vmatprep.mubr.f32.mxu0 %v1173
      %2081 = vmatmul.mubr.f32.gmra.mxu0 %v1093
      %v2082 = vpop.f32.mrf.mxu0
      %v2083 = vadd.f32 0.0, %v2082
      %v2084 = vpop.f32.mrf.mxu0
      %2085 = vmatprep.mubr.f32.mxu0 %v1176
      %2086 = vmatmul.mubr.f32.gmra.mxu0 %v1095
      %v2087 = vpop.f32.mrf.mxu0
      %v2088 = vadd.f32 0.0, %v2087
      %v2089 = vpop.f32.mrf.mxu0
      %2090 = vmatprep.mubr.f32.mxu0 %v1179
      %2091 = vmatmul.mubr.f32.gmra.mxu0 %v1097
      %v2092 = vpop.f32.mrf.mxu0
      %v2093 = vadd.f32 0.0, %v2092
      %v2094 = vpop.f32.mrf.mxu0
      %2095 = vmatprep.mubr.f32.mxu0 %v1182
      %2096 = vmatmul.mubr.f32.gmra.mxu0 %v1099
      %v2097 = vpop.f32.mrf.mxu0
      %v2098 = vadd.f32 0.0, %v2097
      %v2099 = vpop.f32.mrf.mxu0
      %2100 = vmatprep.mubr.f32.mxu0 %v1185
      %2101 = vmatmul.mubr.f32.gmra.mxu0 %v1101
      %v2102 = vpop.f32.mrf.mxu0
      %v2103 = vadd.f32 0.0, %v2102
      %v2104 = vpop.f32.mrf.mxu0
      %2105 = vmatprep.mubr.f32.mxu0 %v1188
      %2106 = vmatmul.mubr.f32.gmra.mxu0 %v1103
      %v2107 = vpop.f32.mrf.mxu0
      %v2108 = vadd.f32 0.0, %v2107
      %v2109 = vpop.f32.mrf.mxu0
      %2110 = vmatprep.mubr.f32.mxu0 %v1191
      %2111 = vmatmul.mubr.f32.gmra.mxu0 %v1105
      %v2112 = vpop.f32.mrf.mxu0
      %v2113 = vadd.f32 0.0, %v2112
      %v2114 = vpop.f32.mrf.mxu0
      %2115 = vmatprep.mubr.f32.mxu0 %v1194
      %2116 = vmatmul.mubr.f32.gmra.mxu0 %v1107
      %v2117 = vpop.f32.mrf.mxu0
      %v2118 = vadd.f32 0.0, %v2117
      %v2119 = vpop.f32.mrf.mxu0
      %2120 = vmatprep.mubr.f32.mxu0 %v1197
      %2121 = vmatmul.mubr.f32.gmra.mxu0 %v1109
      %v2122 = vpop.f32.mrf.mxu0
      %v2123 = vadd.f32 0.0, %v2122
      %v2124 = vpop.f32.mrf.mxu0
      %2125 = vdwg.mxu0
      %2126 = vst [vmem:[%s239] sm:$0xff] %v1266
      %2127 = vst [vmem:[%s239 + $0x8] sm:$0xff] %v1268
      %2128 = vst [vmem:[%s239 + $0x10] sm:$0xff] %v1505
      %2129 = vst [vmem:[%s239 + $0x18] sm:$0xff] %v1507
      %2130 = vst [vmem:[%s239 + $0x20] sm:$0xff] %v1744
      %2131 = vst [vmem:[%s239 + $0x28] sm:$0xff] %v1746
      %vm2132 = vcmask 130048
      %2133 = vst.msk [vmem:[%s239 + $0x30] sm:$0xff] %vm2132, %v1983
      %2134 = vst [vmem:[%s239 + $0x38] sm:$0xff] %v1272
      %2135 = vst [vmem:[%s239 + $0x40] sm:$0xff] %v1274
      %2136 = vst [vmem:[%s239 + $0x48] sm:$0xff] %v1511
      %2137 = vst [vmem:[%s239 + $0x50] sm:$0xff] %v1513
      %2138 = vst [vmem:[%s239 + $0x58] sm:$0xff] %v1750
      %2139 = vst [vmem:[%s239 + $0x60] sm:$0xff] %v1752
      %2140 = vst.msk [vmem:[%s239 + $0x68] sm:$0xff] %vm2132, %v1988
      %2141 = vst [vmem:[%s239 + $0x70] sm:$0xff] %v1278
      %2142 = vst [vmem:[%s239 + $0x78] sm:$0xff] %v1280
      %2143 = vst [vmem:[%s239 + $0x80] sm:$0xff] %v1517
      %2144 = vst [vmem:[%s239 + $0x88] sm:$0xff] %v1519
      %2145 = vst [vmem:[%s239 + $0x90] sm:$0xff] %v1756
      %2146 = vst [vmem:[%s239 + $0x98] sm:$0xff] %v1758
      %2147 = vst.msk [vmem:[%s239 + $0xa0] sm:$0xff] %vm2132, %v1993
      %2148 = vst [vmem:[%s239 + $0xa8] sm:$0xff] %v1284
      %2149 = vst [vmem:[%s239 + $0xb0] sm:$0xff] %v1286
      %2150 = vst [vmem:[%s239 + $0xb8] sm:$0xff] %v1523
      %2151 = vst [vmem:[%s239 + $0xc0] sm:$0xff] %v1525
      %2152 = vst [vmem:[%s239 + $0xc8] sm:$0xff] %v1762
      %2153 = vst [vmem:[%s239 + $0xd0] sm:$0xff] %v1764
      %2154 = vst.msk [vmem:[%s239 + $0xd8] sm:$0xff] %vm2132, %v1998
      %2155 = vst [vmem:[%s239 + $0xe0] sm:$0xff] %v1290
      %2156 = vst [vmem:[%s239 + $0xe8] sm:$0xff] %v1292
      %2157 = vst [vmem:[%s239 + $0xf0] sm:$0xff] %v1529
      %2158 = vst [vmem:[%s239 + $0xf8] sm:$0xff] %v1531
      %2159 = vst [vmem:[%s239 + $0x100] sm:$0xff] %v1768
      %2160 = vst [vmem:[%s239 + $0x108] sm:$0xff] %v1770
      %2161 = vst.msk [vmem:[%s239 + $0x110] sm:$0xff] %vm2132, %v2003
      %2162 = vst [vmem:[%s239 + $0x118] sm:$0xff] %v1296
      %2163 = vst [vmem:[%s239 + $0x120] sm:$0xff] %v1298
      %2164 = vst [vmem:[%s239 + $0x128] sm:$0xff] %v1535
      %2165 = vst [vmem:[%s239 + $0x130] sm:$0xff] %v1537
      %2166 = vst [vmem:[%s239 + $0x138] sm:$0xff] %v1774
      %2167 = vst [vmem:[%s239 + $0x140] sm:$0xff] %v1776
      %2168 = vst.msk [vmem:[%s239 + $0x148] sm:$0xff] %vm2132, %v2008
      %2169 = vst [vmem:[%s239 + $0x150] sm:$0xff] %v1302
      %2170 = vst [vmem:[%s239 + $0x158] sm:$0xff] %v1304
      %2171 = vst [vmem:[%s239 + $0x160] sm:$0xff] %v1541
      %2172 = vst [vmem:[%s239 + $0x168] sm:$0xff] %v1543
      %2173 = vst [vmem:[%s239 + $0x170] sm:$0xff] %v1780
      %2174 = vst [vmem:[%s239 + $0x178] sm:$0xff] %v1782
      %2175 = vst.msk [vmem:[%s239 + $0x180] sm:$0xff] %vm2132, %v2013
      %2176 = vst [vmem:[%s239 + $0x188] sm:$0xff] %v1308
      %2177 = vst [vmem:[%s239 + $0x190] sm:$0xff] %v1310
      %2178 = vst [vmem:[%s239 + $0x198] sm:$0xff] %v1547
      %2179 = vst [vmem:[%s239 + $0x1a0] sm:$0xff] %v1549
      %2180 = vst [vmem:[%s239 + $0x1a8] sm:$0xff] %v1786
      %2181 = vst [vmem:[%s239 + $0x1b0] sm:$0xff] %v1788
      %2182 = vst.msk [vmem:[%s239 + $0x1b8] sm:$0xff] %vm2132, %v2018
      %2183 = vst [vmem:[%s239 + $0x1c0] sm:$0xff] %v1314
      %2184 = vst [vmem:[%s239 + $0x1c8] sm:$0xff] %v1316
      %2185 = vst [vmem:[%s239 + $0x1d0] sm:$0xff] %v1553
      %2186 = vst [vmem:[%s239 + $0x1d8] sm:$0xff] %v1555
      %2187 = vst [vmem:[%s239 + $0x1e0] sm:$0xff] %v1792
      %2188 = vst [vmem:[%s239 + $0x1e8] sm:$0xff] %v1794
      %2189 = vst.msk [vmem:[%s239 + $0x1f0] sm:$0xff] %vm2132, %v2023
      %2190 = vst [vmem:[%s239 + $0x1f8] sm:$0xff] %v1320
      %2191 = vst [vmem:[%s239 + $0x200] sm:$0xff] %v1322
      %2192 = vst [vmem:[%s239 + $0x208] sm:$0xff] %v1559
      %2193 = vst [vmem:[%s239 + $0x210] sm:$0xff] %v1561
      %2194 = vst [vmem:[%s239 + $0x218] sm:$0xff] %v1798
      %2195 = vst [vmem:[%s239 + $0x220] sm:$0xff] %v1800
      %2196 = vst.msk [vmem:[%s239 + $0x228] sm:$0xff] %vm2132, %v2028
      %2197 = vst [vmem:[%s239 + $0x230] sm:$0xff] %v1326
      %2198 = vst [vmem:[%s239 + $0x238] sm:$0xff] %v1328
      %2199 = vst [vmem:[%s239 + $0x240] sm:$0xff] %v1565
      %2200 = vst [vmem:[%s239 + $0x248] sm:$0xff] %v1567
      %2201 = vst [vmem:[%s239 + $0x250] sm:$0xff] %v1804
      %2202 = vst [vmem:[%s239 + $0x258] sm:$0xff] %v1806
      %2203 = vst.msk [vmem:[%s239 + $0x260] sm:$0xff] %vm2132, %v2033
      %2204 = vst [vmem:[%s239 + $0x268] sm:$0xff] %v1332
      %2205 = vst [vmem:[%s239 + $0x270] sm:$0xff] %v1334
      %2206 = vst [vmem:[%s239 + $0x278] sm:$0xff] %v1571
      %2207 = vst [vmem:[%s239 + $0x280] sm:$0xff] %v1573
      %2208 = vst [vmem:[%s239 + $0x288] sm:$0xff] %v1810
      %2209 = vst [vmem:[%s239 + $0x290] sm:$0xff] %v1812
      %2210 = vst.msk [vmem:[%s239 + $0x298] sm:$0xff] %vm2132, %v2038
      %2211 = vst [vmem:[%s239 + $0x2a0] sm:$0xff] %v1338
      %2212 = vst [vmem:[%s239 + $0x2a8] sm:$0xff] %v1340
      %2213 = vst [vmem:[%s239 + $0x2b0] sm:$0xff] %v1577
      %2214 = vst [vmem:[%s239 + $0x2b8] sm:$0xff] %v1579
      %2215 = vst [vmem:[%s239 + $0x2c0] sm:$0xff] %v1816
      %2216 = vst [vmem:[%s239 + $0x2c8] sm:$0xff] %v1818
      %2217 = vst.msk [vmem:[%s239 + $0x2d0] sm:$0xff] %vm2132, %v2043
      %2218 = vst [vmem:[%s239 + $0x2d8] sm:$0xff] %v1344
      %2219 = vst [vmem:[%s239 + $0x2e0] sm:$0xff] %v1346
      %2220 = vst [vmem:[%s239 + $0x2e8] sm:$0xff] %v1583
      %2221 = vst [vmem:[%s239 + $0x2f0] sm:$0xff] %v1585
      %2222 = vst [vmem:[%s239 + $0x2f8] sm:$0xff] %v1822
      %2223 = vst [vmem:[%s239 + $0x300] sm:$0xff] %v1824
      %2224 = vst.msk [vmem:[%s239 + $0x308] sm:$0xff] %vm2132, %v2048
      %2225 = vst [vmem:[%s239 + $0x310] sm:$0xff] %v1350
      %2226 = vst [vmem:[%s239 + $0x318] sm:$0xff] %v1352
      %2227 = vst [vmem:[%s239 + $0x320] sm:$0xff] %v1589
      %2228 = vst [vmem:[%s239 + $0x328] sm:$0xff] %v1591
      %2229 = vst [vmem:[%s239 + $0x330] sm:$0xff] %v1828
      %2230 = vst [vmem:[%s239 + $0x338] sm:$0xff] %v1830
      %2231 = vst.msk [vmem:[%s239 + $0x340] sm:$0xff] %vm2132, %v2053
      %2232 = vst [vmem:[%s239 + $0x348] sm:$0xff] %v1356
      %2233 = vst [vmem:[%s239 + $0x350] sm:$0xff] %v1358
      %2234 = vst [vmem:[%s239 + $0x358] sm:$0xff] %v1595
      %2235 = vst [vmem:[%s239 + $0x360] sm:$0xff] %v1597
      %2236 = vst [vmem:[%s239 + $0x368] sm:$0xff] %v1834
      %2237 = vst [vmem:[%s239 + $0x370] sm:$0xff] %v1836
      %2238 = vst.msk [vmem:[%s239 + $0x378] sm:$0xff] %vm2132, %v2058
      %2239 = vst [vmem:[%s239 + $0x380] sm:$0xff] %v1362
      %2240 = vst [vmem:[%s239 + $0x388] sm:$0xff] %v1364
      %2241 = vst [vmem:[%s239 + $0x390] sm:$0xff] %v1601
      %2242 = vst [vmem:[%s239 + $0x398] sm:$0xff] %v1603
      %2243 = vst [vmem:[%s239 + $0x3a0] sm:$0xff] %v1840
      %2244 = vst [vmem:[%s239 + $0x3a8] sm:$0xff] %v1842
      %2245 = vst.msk [vmem:[%s239 + $0x3b0] sm:$0xff] %vm2132, %v2063
      %2246 = vst [vmem:[%s239 + $0x3b8] sm:$0xff] %v1368
      %2247 = vst [vmem:[%s239 + $0x3c0] sm:$0xff] %v1370
      %2248 = vst [vmem:[%s239 + $0x3c8] sm:$0xff] %v1607
      %2249 = vst [vmem:[%s239 + $0x3d0] sm:$0xff] %v1609
      %2250 = vst [vmem:[%s239 + $0x3d8] sm:$0xff] %v1846
      %2251 = vst [vmem:[%s239 + $0x3e0] sm:$0xff] %v1848
      %2252 = vst.msk [vmem:[%s239 + $0x3e8] sm:$0xff] %vm2132, %v2068
      %2253 = vst [vmem:[%s239 + $0x3f0] sm:$0xff] %v1374
      %2254 = vst [vmem:[%s239 + $0x3f8] sm:$0xff] %v1376
      %2255 = vst [vmem:[%s239 + $0x400] sm:$0xff] %v1613
      %2256 = vst [vmem:[%s239 + $0x408] sm:$0xff] %v1615
      %2257 = vst [vmem:[%s239 + $0x410] sm:$0xff] %v1852
      %2258 = vst [vmem:[%s239 + $0x418] sm:$0xff] %v1854
      %2259 = vst.msk [vmem:[%s239 + $0x420] sm:$0xff] %vm2132, %v2073
      %2260 = vst [vmem:[%s239 + $0x428] sm:$0xff] %v1380
      %2261 = vst [vmem:[%s239 + $0x430] sm:$0xff] %v1382
      %2262 = vst [vmem:[%s239 + $0x438] sm:$0xff] %v1619
      %2263 = vst [vmem:[%s239 + $0x440] sm:$0xff] %v1621
      %2264 = vst [vmem:[%s239 + $0x448] sm:$0xff] %v1858
      %2265 = vst [vmem:[%s239 + $0x450] sm:$0xff] %v1860
      %2266 = vst.msk [vmem:[%s239 + $0x458] sm:$0xff] %vm2132, %v2078
      %2267 = vst [vmem:[%s239 + $0x460] sm:$0xff] %v1386
      %2268 = vst [vmem:[%s239 + $0x468] sm:$0xff] %v1388
      %2269 = vst [vmem:[%s239 + $0x470] sm:$0xff] %v1625
      %2270 = vst [vmem:[%s239 + $0x478] sm:$0xff] %v1627
      %2271 = vst [vmem:[%s239 + $0x480] sm:$0xff] %v1864
      %2272 = vst [vmem:[%s239 + $0x488] sm:$0xff] %v1866
      %2273 = vst.msk [vmem:[%s239 + $0x490] sm:$0xff] %vm2132, %v2083
      %2274 = vst [vmem:[%s239 + $0x498] sm:$0xff] %v1392
      %2275 = vst [vmem:[%s239 + $0x4a0] sm:$0xff] %v1394
      %2276 = vst [vmem:[%s239 + $0x4a8] sm:$0xff] %v1631
      %2277 = vst [vmem:[%s239 + $0x4b0] sm:$0xff] %v1633
      %2278 = vst [vmem:[%s239 + $0x4b8] sm:$0xff] %v1870
      %2279 = vst [vmem:[%s239 + $0x4c0] sm:$0xff] %v1872
      %2280 = vst.msk [vmem:[%s239 + $0x4c8] sm:$0xff] %vm2132, %v2088
      %2281 = vst [vmem:[%s239 + $0x4d0] sm:$0xff] %v1398
      %2282 = vst [vmem:[%s239 + $0x4d8] sm:$0xff] %v1400
      %2283 = vst [vmem:[%s239 + $0x4e0] sm:$0xff] %v1637
      %2284 = vst [vmem:[%s239 + $0x4e8] sm:$0xff] %v1639
      %2285 = vst [vmem:[%s239 + $0x4f0] sm:$0xff] %v1876
      %2286 = vst [vmem:[%s239 + $0x4f8] sm:$0xff] %v1878
      %2287 = vst.msk [vmem:[%s239 + $0x500] sm:$0xff] %vm2132, %v2093
      %2288 = vst [vmem:[%s239 + $0x508] sm:$0xff] %v1404
      %2289 = vst [vmem:[%s239 + $0x510] sm:$0xff] %v1406
      %2290 = vst [vmem:[%s239 + $0x518] sm:$0xff] %v1643
      %2291 = vst [vmem:[%s239 + $0x520] sm:$0xff] %v1645
      %2292 = vst [vmem:[%s239 + $0x528] sm:$0xff] %v1882
      %2293 = vst [vmem:[%s239 + $0x530] sm:$0xff] %v1884
      %2294 = vst.msk [vmem:[%s239 + $0x538] sm:$0xff] %vm2132, %v2098
      %2295 = vst [vmem:[%s239 + $0x540] sm:$0xff] %v1410
      %2296 = vst [vmem:[%s239 + $0x548] sm:$0xff] %v1412
      %2297 = vst [vmem:[%s239 + $0x550] sm:$0xff] %v1649
      %2298 = vst [vmem:[%s239 + $0x558] sm:$0xff] %v1651
      %2299 = vst [vmem:[%s239 + $0x560] sm:$0xff] %v1888
      %2300 = vst [vmem:[%s239 + $0x568] sm:$0xff] %v1890
      %2301 = vst.msk [vmem:[%s239 + $0x570] sm:$0xff] %vm2132, %v2103
      %2302 = vst [vmem:[%s239 + $0x578] sm:$0xff] %v1416
      %2303 = vst [vmem:[%s239 + $0x580] sm:$0xff] %v1418
      %2304 = vst [vmem:[%s239 + $0x588] sm:$0xff] %v1655
      %2305 = vst [vmem:[%s239 + $0x590] sm:$0xff] %v1657
      %2306 = vst [vmem:[%s239 + $0x598] sm:$0xff] %v1894
      %2307 = vst [vmem:[%s239 + $0x5a0] sm:$0xff] %v1896
      %2308 = vst.msk [vmem:[%s239 + $0x5a8] sm:$0xff] %vm2132, %v2108
      %2309 = vst [vmem:[%s239 + $0x5b0] sm:$0xff] %v1422
      %2310 = vst [vmem:[%s239 + $0x5b8] sm:$0xff] %v1424
      %2311 = vst [vmem:[%s239 + $0x5c0] sm:$0xff] %v1661
      %2312 = vst [vmem:[%s239 + $0x5c8] sm:$0xff] %v1663
      %2313 = vst [vmem:[%s239 + $0x5d0] sm:$0xff] %v1900
      %2314 = vst [vmem:[%s239 + $0x5d8] sm:$0xff] %v1902
      %2315 = vst.msk [vmem:[%s239 + $0x5e0] sm:$0xff] %vm2132, %v2113
      %2316 = vst [vmem:[%s239 + $0x5e8] sm:$0xff] %v1428
      %2317 = vst [vmem:[%s239 + $0x5f0] sm:$0xff] %v1430
      %2318 = vst [vmem:[%s239 + $0x5f8] sm:$0xff] %v1667
      %2319 = vst [vmem:[%s239 + $0x600] sm:$0xff] %v1669
      %2320 = vst [vmem:[%s239 + $0x608] sm:$0xff] %v1906
      %2321 = vst [vmem:[%s239 + $0x610] sm:$0xff] %v1908
      %2322 = vst.msk [vmem:[%s239 + $0x618] sm:$0xff] %vm2132, %v2118
      %2323 = vst [vmem:[%s239 + $0x620] sm:$0xff] %v1434
      %2324 = vst [vmem:[%s239 + $0x628] sm:$0xff] %v1436
      %2325 = vst [vmem:[%s239 + $0x630] sm:$0xff] %v1673
      %2326 = vst [vmem:[%s239 + $0x638] sm:$0xff] %v1675
      %2327 = vst [vmem:[%s239 + $0x640] sm:$0xff] %v1912
      %2328 = vst [vmem:[%s239 + $0x648] sm:$0xff] %v1914
      %2329 = vst.msk [vmem:[%s239 + $0x650] sm:$0xff] %vm2132, %v2123
      %s2330 = smul.u32 29, %s19
      %p2331 = scmp.lt.s32.totalorder %s18, 0
      %s2332 = scalar_select %p2331, %s18, 0
      %p2333 = scmp.lt.s32.totalorder %s2330, 86
      %s2334 = scalar_select %p2333, %s2330, 86
      %s2335 = smul.addr %s2334, 7
      %s2336 = smul.addr %s2332, 609
      %s2337 = sadd.s32 %s2335, %s2336
      %s2338 = smul.addr %s2337, 8
      %s2339 = scalar_lea.vmem %s3, %s2338
      // Predicated region
      $region33: #{tpu_custom_call.1} parent=31 // pred_check
        %p2340 = pneg %p124
      $region34: #{tpu_custom_call.1} parent=31 // pred_check_branch
        %2342 = sbr.rel (%p2340) target = $region36
      $region35: #{tpu_custom_call.1} parent=31 // pred_region
        %s2343 = smul.u32 29, %s19
      $region36: #{tpu_custom_call.1} parent=31 // pred_fallthru
        _
    $region32: #{tpu_custom_call.1} parent=5 // pred_fallthru
      _
    %p2344 = scmp.le.s32.totalorder 2, %s9
    // Predicated region
    $region37: #{tpu_custom_call.1} parent=5 // pred_check
      %p2345 = pneg %p2344
    $region38: #{tpu_custom_call.1} parent=5 // pred_check_branch
      %2347 = sbr.rel (%p2345) target = $region40
    $region39: #{tpu_custom_call.1} parent=5 // pred_region
      %s2348 = ssub.s32 %s9, 2
      // Predicated region
      $region41: #{tpu_custom_call.1} parent=39 // pred_check
        %p2349 = pneg %p130
      $region42: #{tpu_custom_call.1} parent=39 // pred_check_branch
        %2351 = sbr.rel (%p2349) target = $region44
      $region43: #{tpu_custom_call.1} parent=39 // pred_region
        %s2352 = smul.u32 29, %s21
        %p2353 = scmp.lt.s32.totalorder %s20, 0
        %s2354 = scalar_select %p2353, %s20, 0
        %p2355 = scmp.lt.s32.totalorder %s2352, 86
        %s2356 = scalar_select %p2355, %s2352, 86
        %s2357 = smul.addr %s2356, 7
        %s2358 = smul.addr %s2354, 609
        %s2359 = sadd.s32 %s2357, %s2358
        %s2360 = smul.addr %s2359, 8
        %s2361 = scalar_lea.vmem %s3, %s2360
      $region44: #{tpu_custom_call.1} parent=39 // pred_fallthru
        _
    $region40: #{tpu_custom_call.1} parent=5 // pred_fallthru
      _
  $region6: #{tpu_custom_call.1} parent=0 // loop_footer
    %s13 = sadd.s32 1, %s9
  $region7: #{tpu_custom_call.1} parent=0 // loop_footer_branch
    %8 = sbr.rel target = $region3
  $region8: #{tpu_custom_call.1} parent=0 // loop_exit
    _

</llo_original>
